<compile_context>
chip_gen: v7x
topology: tpu7x:2x2x1
jax: 0.10.0
libtpu: 0.0.40
codegen_flags: <defaults>
</compile_context>

<pallas_src>
import functools

import jax
import jax.numpy as jnp
from jax import lax
from jax.experimental import pallas as pl
from jax.experimental.pallas import tpu as pltpu

EPS = 1e-5  # nn.InstanceNorm2d default (affine=False, biased variance)


def convblock_kernel(mask_ref, x_ref, w1_ref, w2_ref, w3_ref, o_ref,
                     xn_ref, col_ref, *, W, HW, nb,
                     cin_p, c1, c1_p, c2, c2_p, c3, c3_p, cout,
                     has_downsample, compute_dtype):
    nbHW = nb * HW

    def inorm_relu(src, C):
        # Per-sample InstanceNorm (biased var, two-pass) + ReLU, written into
        # xn_ref[0:C].  Lane segments are 128-aligned (HW % 128 == 0) and row
        # counts are sublane-tile aligned, so every store is unmasked.
        for s in range(nb):
            lo = s * HW
            seg = src[0:C, lo:lo + HW]
            mean = jnp.mean(seg, axis=1, keepdims=True)
            centered = seg - mean
            var = jnp.mean(centered * centered, axis=1, keepdims=True)
            y = centered * lax.rsqrt(var + EPS)
            xn_ref[0:C, lo:lo + HW] = jnp.maximum(y, 0.0)

    def conv3x3(C, w_ref):
        # 'Same' 3x3 conv of xn_ref[0:C] for ALL nb samples as ONE MXU matmul.
        # Shifted taps are lane rolls over the whole nb*HW axis; the border
        # masks zero every lane whose true neighbour lies in the zero padding,
        # which also kills every lane that wrapped across a sample boundary.
        xn = xn_ref[0:C, :]
        for ky in range(3):
            for kx in range(3):
                k = ky * 3 + kx
                shift = (ky - 1) * W + (kx - 1)      # flat offset of this tap
                if shift == 0:
                    tap = xn
                else:
                    rolled = pltpu.roll(xn, (-shift) % nbHW, 1)
                    tap = rolled * mask_ref[k:k + 1, :]
                col_ref[k * C:(k + 1) * C, :] = tap.astype(compute_dtype)
        return jnp.dot(w_ref[...], col_ref[0:9 * C, :],
                       preferred_element_type=jnp.float32)

    # ---- stage 1: norm(x) -> conv1 (+ folded 1x1 downsample) --------------
    inorm_relu(x_ref, cin_p)
    r1 = conv3x3(cin_p, w1_ref)                     # (c1_p [+ cout], nb*HW)
    out1 = r1[0:c1_p, :]
    residual = r1[c1_p:c1_p + cout, :] if has_downsample else None

    # ---- stage 2 -----------------------------------------------------------
    inorm_relu(out1, c1_p)
    out2 = conv3x3(c1_p, w2_ref)                    # (c2_p, nb*HW)

    # ---- stage 3 -----------------------------------------------------------
    inorm_relu(out2, c2_p)
    out3 = conv3x3(c2_p, w3_ref)                    # (c3_p, nb*HW)

    # torch.cat((out1, out2, out3), 1) + residual, one aligned full-block store.
    out_cat = jnp.concatenate(
        [out1[0:c1, :], out2[0:c2, :], out3[0:c3, :]], axis=0)
    if residual is None:                            # identity residual path
        residual = x_ref[0:cout, :]
    o_ref[...] = (out_cat + residual).astype(o_ref.dtype)


def _round_up(v, m):
    return -(-v // m) * m


def _flatten_w3x3(w_oihw, o_pad, i_pad, dtype):
    """OIHW (O, I, 3, 3) -> (o_pad, 9*i_pad); column = (ky*3+kx)*i_pad + i."""
    o, i = w_oihw.shape[0], w_oihw.shape[1]
    w = jnp.pad(w_oihw, ((0, o_pad - o), (0, i_pad - i), (0, 0), (0, 0)))
    return jnp.transpose(w, (0, 2, 3, 1)).reshape(o_pad, 9 * i_pad).astype(dtype)


def _border_masks(H, W, nb):
    """(9, nb*H*W) f32 {0,1}: in-bounds-neighbour mask per 3x3 tap, per sample."""
    pos = jnp.arange(H * W, dtype=jnp.int32)
    row, col = pos // W, pos % W
    rows = []
    for ky in range(3):
        for kx in range(3):
            dy, dx = ky - 1, kx - 1
            ok = ((row + dy >= 0) & (row + dy < H) &
                  (col + dx >= 0) & (col + dx < W))
            rows.append(ok)
    m = jnp.stack(rows, axis=0).astype(jnp.float32)      # (9, H*W)
    return jnp.tile(m, (1, nb))                          # (9, nb*H*W)


def conv_block_pallas(x_nchw, w1_oihw, w2_oihw, w3_oihw, wd_oihw=None, *,
                      batch_block=None, compute_dtype=jnp.bfloat16):
    """ConvBlock forward. PyTorch conventions in/out (NCHW input, OIHW weights)."""
    N, Cin, H, W = x_nchw.shape
    c1, c2, c3 = w1_oihw.shape[0], w2_oihw.shape[0], w3_oihw.shape[0]
    cout = c1 + c2 + c3
    HW = H * W
    has_downsample = wd_oihw is not None
    if not has_downsample:
        assert Cin == cout, "identity residual requires in_planes == out_planes"

    # Sublane tile for the compute dtype (8 for f32, 16 for bf16): keeps every
    # im2col scratch store / read tile-aligned.
    SUB = max(8, 32 // jnp.dtype(compute_dtype).itemsize)
    cin_p = _round_up(Cin, SUB)
    c1_p, c2_p, c3_p = (_round_up(c, SUB) for c in (c1, c2, c3))
    cmax_p = max(cin_p, c1_p, c2_p)

    if batch_block is None:
        divisors = [d for d in range(1, N + 1) if N % d == 0 and d <= 8]
        batch_block = max(divisors)
        ge2 = [d for d in divisors if N // d >= 2]
        if ge2:                      # keep grid >= 2 so v7x megacore can split it
            batch_block = max(ge2)
    nb = batch_block
    assert N % nb == 0, "batch must be divisible by batch_block"
    nbHW = nb * HW
    assert nbHW % 128 == 0 or nb == N, "nb*H*W must be a multiple of 128"

    # C-major, lane-batched layout (Cin_p, N*HW).  The single XLA transpose here
    # is layout plumbing so the kernel only ever sees lane-dense slabs.
    x = jnp.transpose(x_nchw.astype(jnp.float32).reshape(N, Cin, HW),
                      (1, 0, 2)).reshape(Cin, N * HW)
    if cin_p != Cin:
        x = jnp.pad(x, ((0, cin_p - Cin), (0, 0)))

    w1 = _flatten_w3x3(w1_oihw, c1_p, cin_p, compute_dtype)
    if has_downsample:
        # Fold the 1x1 downsample into conv1: its rows only occupy the
        # centre-tap (k == 4) column block, so one matmul yields out1 + residual.
        wd = wd_oihw[:, :, 0, 0].astype(compute_dtype)          # (cout, Cin)
        wd_embed = jnp.zeros((cout, 9 * cin_p), compute_dtype)
        wd_embed = wd_embed.at[:, 4 * cin_p:4 * cin_p + Cin].set(wd)
        w1 = jnp.concatenate([w1, wd_embed], axis=0)
        m1 = _round_up(w1.shape[0], SUB)
        if m1 != w1.shape[0]:
            w1 = jnp.pad(w1, ((0, m1 - w1.shape[0]), (0, 0)))
    w2 = _flatten_w3x3(w2_oihw, c2_p, c1_p, compute_dtype)
    w3 = _flatten_w3x3(w3_oihw, c3_p, c2_p, compute_dtype)

    mask = _border_masks(H, W, nb)

    kernel = functools.partial(
        convblock_kernel, W=W, HW=HW, nb=nb, cin_p=cin_p,
        c1=c1, c1_p=c1_p, c2=c2, c2_p=c2_p, c3=c3, c3_p=c3_p, cout=cout,
        has_downsample=has_downsample, compute_dtype=compute_dtype)

    out = pl.pallas_call(
        kernel,
        out_shape=jax.ShapeDtypeStruct((cout, N * HW), jnp.float32),
        grid=(N // nb,),
        in_specs=[
            pl.BlockSpec((9, nbHW), lambda n: (0, 0)),        # border masks
            pl.BlockSpec((cin_p, nbHW), lambda n: (0, n)),    # x (nb samples/step)
            pl.BlockSpec(w1.shape, lambda n: (0, 0)),
            pl.BlockSpec(w2.shape, lambda n: (0, 0)),
            pl.BlockSpec(w3.shape, lambda n: (0, 0)),
        ],
        out_specs=pl.BlockSpec((cout, nbHW), lambda n: (0, n)),
        scratch_shapes=[
            pltpu.VMEM((cmax_p, nbHW), jnp.float32),          # normalized acts
            pltpu.VMEM((9 * cmax_p, nbHW), compute_dtype),    # im2col staging
        ],
        compiler_params=pltpu.CompilerParams(
            dimension_semantics=("parallel",)),
    )(mask, x, w1, w2, w3)

    # (Cout, N*HW) -> NCHW
    return jnp.transpose(out.reshape(cout, N, H, W), (1, 0, 2, 3))


def conv_block_reference(x, w1, w2, w3, wd):
    """Pure-JAX NCHW reference mirroring the PyTorch module."""
    def inorm(t):
        mean = jnp.mean(t, axis=(2, 3), keepdims=True)
        var = jnp.mean((t - mean) ** 2, axis=(2, 3), keepdims=True)
        return (t - mean) / jnp.sqrt(var + EPS)

    def conv(t, w, pad):
        return lax.conv_general_dilated(
            t, w, (1, 1), [(pad, pad), (pad, pad)],
            dimension_numbers=("NCHW", "OIHW", "NCHW"))

    relu = lambda t: jnp.maximum(t, 0.0)
    out1 = conv(relu(inorm(x)), w1, 1)
    out2 = conv(relu(inorm(out1)), w2, 1)
    out3 = conv(relu(inorm(out2)), w3, 1)
    out = jnp.concatenate([out1, out2, out3], axis=1)
    residual = conv(relu(inorm(x)), wd, 0) if wd is not None else x
    return out + residual


if __name__ == "__main__":
    key = jax.random.PRNGKey(0)
    keys = jax.random.split(key, 9)
    H = W = 16

    # Case 1: ConvBlock(8, 16) -> has the 1x1-conv downsample branch.
    in_planes, out_planes = 8, 16
    N = 4
    c1, c2, c3 = out_planes // 2, out_planes // 4, out_planes // 4
    x = jax.random.normal(keys[0], (N, in_planes, H, W), jnp.float32)
    w1 = jax.random.normal(keys[1], (c1, in_planes, 3, 3), jnp.float32) * 0.1
    w2 = jax.random.normal(keys[2], (c2, c1, 3, 3), jnp.float32) * 0.1
    w3 = jax.random.normal(keys[3], (c3, c2, 3, 3), jnp.float32) * 0.1
    wd = jax.random.normal(keys[4], (out_planes, in_planes, 1, 1), jnp.float32) * 0.1

    ref = conv_block_reference(x, w1, w2, w3, wd)

    out = jax.block_until_ready(
        conv_block_pallas(x, w1, w2, w3, wd, compute_dtype=jnp.float32))
    assert out.shape == (N, out_planes, H, W), out.shape
    assert jnp.allclose(out, ref, atol=1e-4, rtol=1e-4), \
        float(jnp.max(jnp.abs(out - ref)))

    # Default path: bf16 MXU operands, f32 accumulation / f32 norm math.
    out_bf16 = jax.block_until_ready(conv_block_pallas(x, w1, w2, w3, wd))
    assert jnp.allclose(out_bf16, ref, atol=5e-2, rtol=5e-2), \
        float(jnp.max(jnp.abs(out_bf16 - ref)))

    # Case 2: ConvBlock(16, 16) -> identity residual, no downsample weight.
    ip2 = op2 = 16
    N2 = 4
    d1, d2, d3 = op2 // 2, op2 // 4, op2 // 4
    x2 = jax.random.normal(keys[5], (N2, ip2, H, W), jnp.float32)
    v1 = jax.random.normal(keys[6], (d1, ip2, 3, 3), jnp.float32) * 0.1
    v2 = jax.random.normal(keys[7], (d2, d1, 3, 3), jnp.float32) * 0.1
    v3 = jax.random.normal(keys[8], (d3, d2, 3, 3), jnp.float32) * 0.1

    ref2 = conv_block_reference(x2, v1, v2, v3, None)
    out2 = jax.block_until_ready(
        conv_block_pallas(x2, v1, v2, v3, None, compute_dtype=jnp.float32))
    assert out2.shape == (N2, op2, H, W), out2.shape
    assert jnp.allclose(out2, ref2, atol=1e-4, rtol=1e-4), \
        float(jnp.max(jnp.abs(out2 - ref2)))

    print("KERNEL_OK")
</pallas_src>

<mosaic_0001>
module attributes {stable_mosaic.version = 11 : i64} {
  func.func @convblock_kernel(%arg0: i32, %arg1: memref<9x512xf32, #tpu.memory_space<vmem>>, %arg2: memref<8x512xf32, #tpu.memory_space<vmem>>, %arg3: memref<24x72xf32, #tpu.memory_space<vmem>>, %arg4: memref<8x72xf32, #tpu.memory_space<vmem>>, %arg5: memref<8x72xf32, #tpu.memory_space<vmem>>, %arg6: memref<16x512xf32, #tpu.memory_space<vmem>>, %arg7: memref<8x512xf32, #tpu.memory_space<vmem>>, %arg8: memref<72x512xf32, #tpu.memory_space<vmem>>) attributes {dimension_semantics = [#tpu.dimension_semantics<parallel>], iteration_bounds = array<i64: 2>, scalar_prefetch = 0 : i64, scratch_operands = 2 : i64, tpu.core_type = #tpu.core_type<tc>, window_params = [{pipeline_mode = #tpu.pipeline_mode<synchronous>, transform_indices = @transform_0, window_bounds = array<i64: 9, 512>}, {transform_indices = @transform_1, window_bounds = array<i64: 8, 512>}, {pipeline_mode = #tpu.pipeline_mode<synchronous>, transform_indices = @transform_2, window_bounds = array<i64: 24, 72>}, {pipeline_mode = #tpu.pipeline_mode<synchronous>, transform_indices = @transform_3, window_bounds = array<i64: 8, 72>}, {pipeline_mode = #tpu.pipeline_mode<synchronous>, transform_indices = @transform_4, window_bounds = array<i64: 8, 72>}, {transform_indices = @transform_5, window_bounds = array<i64: 16, 512>}]} {
    %c0 = arith.constant 0 : index
    %c0_0 = arith.constant 0 : index
    %0 = vector.load %arg2[%c0, %c0_0] : memref<8x512xf32, #tpu.memory_space<vmem>>, vector<8x256xf32>
    %cst = arith.constant dense<0.000000e+00> : vector<8xf32>
    %1 = vector.multi_reduction <add>, %0, %cst [1] : vector<8x256xf32> to vector<8xf32>
    %2 = vector.shape_cast %1 : vector<8xf32> to vector<8x1xf32>
    %cst_1 = arith.constant 2.560000e+02 : f32
    %3 = vector.broadcast %cst_1 : f32 to vector<8x1xf32>
    %4 = arith.divf %2, %3 : vector<8x1xf32>
    %5 = vector.broadcast %4 : vector<8x1xf32> to vector<8x256xf32>
    %6 = arith.subf %0, %5 : vector<8x256xf32>
    %7 = arith.mulf %6, %6 : vector<8x256xf32>
    %cst_2 = arith.constant dense<0.000000e+00> : vector<8xf32>
    %8 = vector.multi_reduction <add>, %7, %cst_2 [1] : vector<8x256xf32> to vector<8xf32>
    %9 = vector.shape_cast %8 : vector<8xf32> to vector<8x1xf32>
    %cst_3 = arith.constant 2.560000e+02 : f32
    %10 = vector.broadcast %cst_3 : f32 to vector<8x1xf32>
    %11 = arith.divf %9, %10 : vector<8x1xf32>
    %cst_4 = arith.constant 9.99999974E-6 : f32
    %12 = vector.broadcast %cst_4 : f32 to vector<8x1xf32>
    %13 = arith.addf %11, %12 : vector<8x1xf32>
    %14 = math.rsqrt %13 : vector<8x1xf32>
    %15 = vector.broadcast %14 : vector<8x1xf32> to vector<8x256xf32>
    %16 = arith.mulf %6, %15 : vector<8x256xf32>
    %cst_5 = arith.constant 0.000000e+00 : f32
    %17 = vector.broadcast %cst_5 : f32 to vector<8x256xf32>
    %18 = arith.maximumf %16, %17 : vector<8x256xf32>
    %c0_6 = arith.constant 0 : index
    %c0_7 = arith.constant 0 : index
    %19 = vector.load %arg7[%c0_6, %c0_7] : memref<8x512xf32, #tpu.memory_space<vmem>>, vector<8x256xf32>
    tpu.vector_store %arg7[%c0_6, %c0_7], %18 {strides = array<i32>} : memref<8x512xf32, #tpu.memory_space<vmem>>, vector<8x256xf32>,
    %c0_8 = arith.constant 0 : index
    %c256 = arith.constant 256 : index
    %20 = vector.load %arg2[%c0_8, %c256] : memref<8x512xf32, #tpu.memory_space<vmem>>, vector<8x256xf32>
    %cst_9 = arith.constant dense<0.000000e+00> : vector<8xf32>
    %21 = vector.multi_reduction <add>, %20, %cst_9 [1] : vector<8x256xf32> to vector<8xf32>
    %22 = vector.shape_cast %21 : vector<8xf32> to vector<8x1xf32>
    %cst_10 = arith.constant 2.560000e+02 : f32
    %23 = vector.broadcast %cst_10 : f32 to vector<8x1xf32>
    %24 = arith.divf %22, %23 : vector<8x1xf32>
    %25 = vector.broadcast %24 : vector<8x1xf32> to vector<8x256xf32>
    %26 = arith.subf %20, %25 : vector<8x256xf32>
    %27 = arith.mulf %26, %26 : vector<8x256xf32>
    %cst_11 = arith.constant dense<0.000000e+00> : vector<8xf32>
    %28 = vector.multi_reduction <add>, %27, %cst_11 [1] : vector<8x256xf32> to vector<8xf32>
    %29 = vector.shape_cast %28 : vector<8xf32> to vector<8x1xf32>
    %cst_12 = arith.constant 2.560000e+02 : f32
    %30 = vector.broadcast %cst_12 : f32 to vector<8x1xf32>
    %31 = arith.divf %29, %30 : vector<8x1xf32>
    %cst_13 = arith.constant 9.99999974E-6 : f32
    %32 = vector.broadcast %cst_13 : f32 to vector<8x1xf32>
    %33 = arith.addf %31, %32 : vector<8x1xf32>
    %34 = math.rsqrt %33 : vector<8x1xf32>
    %35 = vector.broadcast %34 : vector<8x1xf32> to vector<8x256xf32>
    %36 = arith.mulf %26, %35 : vector<8x256xf32>
    %cst_14 = arith.constant 0.000000e+00 : f32
    %37 = vector.broadcast %cst_14 : f32 to vector<8x256xf32>
    %38 = arith.maximumf %36, %37 : vector<8x256xf32>
    %c0_15 = arith.constant 0 : index
    %c256_16 = arith.constant 256 : index
    %39 = vector.load %arg7[%c0_15, %c256_16] : memref<8x512xf32, #tpu.memory_space<vmem>>, vector<8x256xf32>
    tpu.vector_store %arg7[%c0_15, %c256_16], %38 {strides = array<i32>} : memref<8x512xf32, #tpu.memory_space<vmem>>, vector<8x256xf32>,
    %c0_17 = arith.constant 0 : index
    %c0_18 = arith.constant 0 : index
    %40 = vector.load %arg7[%c0_17, %c0_18] : memref<8x512xf32, #tpu.memory_space<vmem>>, vector<8x512xf32>
    %c17_i32 = arith.constant 17 : i32
    %41 = tpu.dynamic_rotate %40 by %c17_i32 dim 1 : vector<8x512xf32>, i32 -> vector<8x512xf32>
    %c0_19 = arith.constant 0 : index
    %c0_20 = arith.constant 0 : index
    %42 = vector.load %arg1[%c0_19, %c0_20] : memref<9x512xf32, #tpu.memory_space<vmem>>, vector<1x512xf32>
    %43 = vector.broadcast %42 : vector<1x512xf32> to vector<8x512xf32>
    %44 = arith.mulf %41, %43 : vector<8x512xf32>
    %c0_21 = arith.constant 0 : index
    %c0_22 = arith.constant 0 : index
    %45 = vector.load %arg8[%c0_21, %c0_22] : memref<72x512xf32, #tpu.memory_space<vmem>>, vector<8x512xf32>
    tpu.vector_store %arg8[%c0_21, %c0_22], %44 {strides = array<i32>} : memref<72x512xf32, #tpu.memory_space<vmem>>, vector<8x512xf32>,
    %c16_i32 = arith.constant 16 : i32
    %46 = tpu.dynamic_rotate %40 by %c16_i32 dim 1 : vector<8x512xf32>, i32 -> vector<8x512xf32>
    %c1 = arith.constant 1 : index
    %c0_23 = arith.constant 0 : index
    %47 = vector.load %arg1[%c1, %c0_23] : memref<9x512xf32, #tpu.memory_space<vmem>>, vector<1x512xf32>
    %48 = vector.broadcast %47 : vector<1x512xf32> to vector<8x512xf32>
    %49 = arith.mulf %46, %48 : vector<8x512xf32>
    %c8 = arith.constant 8 : index
    %c0_24 = arith.constant 0 : index
    %50 = vector.load %arg8[%c8, %c0_24] : memref<72x512xf32, #tpu.memory_space<vmem>>, vector<8x512xf32>
    tpu.vector_store %arg8[%c8, %c0_24], %49 {strides = array<i32>} : memref<72x512xf32, #tpu.memory_space<vmem>>, vector<8x512xf32>,
    %c15_i32 = arith.constant 15 : i32
    %51 = tpu.dynamic_rotate %40 by %c15_i32 dim 1 : vector<8x512xf32>, i32 -> vector<8x512xf32>
    %c2 = arith.constant 2 : index
    %c0_25 = arith.constant 0 : index
    %52 = vector.load %arg1[%c2, %c0_25] : memref<9x512xf32, #tpu.memory_space<vmem>>, vector<1x512xf32>
    %53 = vector.broadcast %52 : vector<1x512xf32> to vector<8x512xf32>
    %54 = arith.mulf %51, %53 : vector<8x512xf32>
    %c16 = arith.constant 16 : index
    %c0_26 = arith.constant 0 : index
    %55 = vector.load %arg8[%c16, %c0_26] : memref<72x512xf32, #tpu.memory_space<vmem>>, vector<8x512xf32>
    tpu.vector_store %arg8[%c16, %c0_26], %54 {strides = array<i32>} : memref<72x512xf32, #tpu.memory_space<vmem>>, vector<8x512xf32>,
    %c1_i32 = arith.constant 1 : i32
    %56 = tpu.dynamic_rotate %40 by %c1_i32 dim 1 : vector<8x512xf32>, i32 -> vector<8x512xf32>
    %c3 = arith.constant 3 : index
    %c0_27 = arith.constant 0 : index
    %57 = vector.load %arg1[%c3, %c0_27] : memref<9x512xf32, #tpu.memory_space<vmem>>, vector<1x512xf32>
    %58 = vector.broadcast %57 : vector<1x512xf32> to vector<8x512xf32>
    %59 = arith.mulf %56, %58 : vector<8x512xf32>
    %c24 = arith.constant 24 : index
    %c0_28 = arith.constant 0 : index
    %60 = vector.load %arg8[%c24, %c0_28] : memref<72x512xf32, #tpu.memory_space<vmem>>, vector<8x512xf32>
    tpu.vector_store %arg8[%c24, %c0_28], %59 {strides = array<i32>} : memref<72x512xf32, #tpu.memory_space<vmem>>, vector<8x512xf32>,
    %c32 = arith.constant 32 : index
    %c0_29 = arith.constant 0 : index
    %61 = vector.load %arg8[%c32, %c0_29] : memref<72x512xf32, #tpu.memory_space<vmem>>, vector<8x512xf32>
    tpu.vector_store %arg8[%c32, %c0_29], %40 {strides = array<i32>} : memref<72x512xf32, #tpu.memory_space<vmem>>, vector<8x512xf32>,
    %c511_i32 = arith.constant 511 : i32
    %62 = tpu.dynamic_rotate %40 by %c511_i32 dim 1 : vector<8x512xf32>, i32 -> vector<8x512xf32>
    %c5 = arith.constant 5 : index
    %c0_30 = arith.constant 0 : index
    %63 = vector.load %arg1[%c5, %c0_30] : memref<9x512xf32, #tpu.memory_space<vmem>>, vector<1x512xf32>
    %64 = vector.broadcast %63 : vector<1x512xf32> to vector<8x512xf32>
    %65 = arith.mulf %62, %64 : vector<8x512xf32>
    %c40 = arith.constant 40 : index
    %c0_31 = arith.constant 0 : index
    %66 = vector.load %arg8[%c40, %c0_31] : memref<72x512xf32, #tpu.memory_space<vmem>>, vector<8x512xf32>
    tpu.vector_store %arg8[%c40, %c0_31], %65 {strides = array<i32>} : memref<72x512xf32, #tpu.memory_space<vmem>>, vector<8x512xf32>,
    %c497_i32 = arith.constant 497 : i32
    %67 = tpu.dynamic_rotate %40 by %c497_i32 dim 1 : vector<8x512xf32>, i32 -> vector<8x512xf32>
    %c6 = arith.constant 6 : index
    %c0_32 = arith.constant 0 : index
    %68 = vector.load %arg1[%c6, %c0_32] : memref<9x512xf32, #tpu.memory_space<vmem>>, vector<1x512xf32>
    %69 = vector.broadcast %68 : vector<1x512xf32> to vector<8x512xf32>
    %70 = arith.mulf %67, %69 : vector<8x512xf32>
    %c48 = arith.constant 48 : index
    %c0_33 = arith.constant 0 : index
    %71 = vector.load %arg8[%c48, %c0_33] : memref<72x512xf32, #tpu.memory_space<vmem>>, vector<8x512xf32>
    tpu.vector_store %arg8[%c48, %c0_33], %70 {strides = array<i32>} : memref<72x512xf32, #tpu.memory_space<vmem>>, vector<8x512xf32>,
    %c496_i32 = arith.constant 496 : i32
    %72 = tpu.dynamic_rotate %40 by %c496_i32 dim 1 : vector<8x512xf32>, i32 -> vector<8x512xf32>
    %c7 = arith.constant 7 : index
    %c0_34 = arith.constant 0 : index
    %73 = vector.load %arg1[%c7, %c0_34] : memref<9x512xf32, #tpu.memory_space<vmem>>, vector<1x512xf32>
    %74 = vector.broadcast %73 : vector<1x512xf32> to vector<8x512xf32>
    %75 = arith.mulf %72, %74 : vector<8x512xf32>
    %c56 = arith.constant 56 : index
    %c0_35 = arith.constant 0 : index
    %76 = vector.load %arg8[%c56, %c0_35] : memref<72x512xf32, #tpu.memory_space<vmem>>, vector<8x512xf32>
    tpu.vector_store %arg8[%c56, %c0_35], %75 {strides = array<i32>} : memref<72x512xf32, #tpu.memory_space<vmem>>, vector<8x512xf32>,
    %c495_i32 = arith.constant 495 : i32
    %77 = tpu.dynamic_rotate %40 by %c495_i32 dim 1 : vector<8x512xf32>, i32 -> vector<8x512xf32>
    %c8_36 = arith.constant 8 : index
    %c0_37 = arith.constant 0 : index
    %78 = vector.load %arg1[%c8_36, %c0_37] : memref<9x512xf32, #tpu.memory_space<vmem>>, vector<1x512xf32>
    %79 = vector.broadcast %78 : vector<1x512xf32> to vector<8x512xf32>
    %80 = arith.mulf %77, %79 : vector<8x512xf32>
    %c64 = arith.constant 64 : index
    %c0_38 = arith.constant 0 : index
    %81 = vector.load %arg8[%c64, %c0_38] : memref<72x512xf32, #tpu.memory_space<vmem>>, vector<8x512xf32>
    tpu.vector_store %arg8[%c64, %c0_38], %80 {strides = array<i32>} : memref<72x512xf32, #tpu.memory_space<vmem>>, vector<8x512xf32>,
    %c0_39 = arith.constant 0 : index
    %c0_40 = arith.constant 0 : index
    %82 = vector.load %arg3[%c0_39, %c0_40] : memref<24x72xf32, #tpu.memory_space<vmem>>, vector<24x72xf32>
    %c0_41 = arith.constant 0 : index
    %c0_42 = arith.constant 0 : index
    %83 = vector.load %arg8[%c0_41, %c0_42] : memref<72x512xf32, #tpu.memory_space<vmem>>, vector<72x512xf32>
    %cst_43 = arith.constant dense<0.000000e+00> : vector<24x512xf32>
    %84 = tpu.matmul %82, %83, %cst_43 {dimension_numbers = #tpu.dot_dimension_numbers<[1], [0], [0], [1], [0, 0, 1, 1], [], []>} : vector<24x72xf32>, vector<72x512xf32>, vector<24x512xf32> -> vector<24x512xf32>
    %85 = vector.extract_strided_slice %84 {offsets = [0, 0], sizes = [8, 512], strides = [1, 1]} : vector<24x512xf32> to vector<8x512xf32>
    %86 = vector.extract_strided_slice %84 {offsets = [8, 0], sizes = [16, 512], strides = [1, 1]} : vector<24x512xf32> to vector<16x512xf32>
    %87 = vector.extract_strided_slice %85 {offsets = [0, 0], sizes = [8, 256], strides = [1, 1]} : vector<8x512xf32> to vector<8x256xf32>
    %cst_44 = arith.constant dense<0.000000e+00> : vector<8xf32>
    %88 = vector.multi_reduction <add>, %87, %cst_44 [1] : vector<8x256xf32> to vector<8xf32>
    %89 = vector.shape_cast %88 : vector<8xf32> to vector<8x1xf32>
    %cst_45 = arith.constant 2.560000e+02 : f32
    %90 = vector.broadcast %cst_45 : f32 to vector<8x1xf32>
    %91 = arith.divf %89, %90 : vector<8x1xf32>
    %92 = vector.broadcast %91 : vector<8x1xf32> to vector<8x256xf32>
    %93 = arith.subf %87, %92 : vector<8x256xf32>
    %94 = arith.mulf %93, %93 : vector<8x256xf32>
    %cst_46 = arith.constant dense<0.000000e+00> : vector<8xf32>
    %95 = vector.multi_reduction <add>, %94, %cst_46 [1] : vector<8x256xf32> to vector<8xf32>
    %96 = vector.shape_cast %95 : vector<8xf32> to vector<8x1xf32>
    %cst_47 = arith.constant 2.560000e+02 : f32
    %97 = vector.broadcast %cst_47 : f32 to vector<8x1xf32>
    %98 = arith.divf %96, %97 : vector<8x1xf32>
    %cst_48 = arith.constant 9.99999974E-6 : f32
    %99 = vector.broadcast %cst_48 : f32 to vector<8x1xf32>
    %100 = arith.addf %98, %99 : vector<8x1xf32>
    %101 = math.rsqrt %100 : vector<8x1xf32>
    %102 = vector.broadcast %101 : vector<8x1xf32> to vector<8x256xf32>
    %103 = arith.mulf %93, %102 : vector<8x256xf32>
    %cst_49 = arith.constant 0.000000e+00 : f32
    %104 = vector.broadcast %cst_49 : f32 to vector<8x256xf32>
    %105 = arith.maximumf %103, %104 : vector<8x256xf32>
    %c0_50 = arith.constant 0 : index
    %c0_51 = arith.constant 0 : index
    %106 = vector.load %arg7[%c0_50, %c0_51] : memref<8x512xf32, #tpu.memory_space<vmem>>, vector<8x256xf32>
    tpu.vector_store %arg7[%c0_50, %c0_51], %105 {strides = array<i32>} : memref<8x512xf32, #tpu.memory_space<vmem>>, vector<8x256xf32>,
    %107 = vector.extract_strided_slice %85 {offsets = [0, 256], sizes = [8, 256], strides = [1, 1]} : vector<8x512xf32> to vector<8x256xf32>
    %cst_52 = arith.constant dense<0.000000e+00> : vector<8xf32>
    %108 = vector.multi_reduction <add>, %107, %cst_52 [1] : vector<8x256xf32> to vector<8xf32>
    %109 = vector.shape_cast %108 : vector<8xf32> to vector<8x1xf32>
    %cst_53 = arith.constant 2.560000e+02 : f32
    %110 = vector.broadcast %cst_53 : f32 to vector<8x1xf32>
    %111 = arith.divf %109, %110 : vector<8x1xf32>
    %112 = vector.broadcast %111 : vector<8x1xf32> to vector<8x256xf32>
    %113 = arith.subf %107, %112 : vector<8x256xf32>
    %114 = arith.mulf %113, %113 : vector<8x256xf32>
    %cst_54 = arith.constant dense<0.000000e+00> : vector<8xf32>
    %115 = vector.multi_reduction <add>, %114, %cst_54 [1] : vector<8x256xf32> to vector<8xf32>
    %116 = vector.shape_cast %115 : vector<8xf32> to vector<8x1xf32>
    %cst_55 = arith.constant 2.560000e+02 : f32
    %117 = vector.broadcast %cst_55 : f32 to vector<8x1xf32>
    %118 = arith.divf %116, %117 : vector<8x1xf32>
    %cst_56 = arith.constant 9.99999974E-6 : f32
    %119 = vector.broadcast %cst_56 : f32 to vector<8x1xf32>
    %120 = arith.addf %118, %119 : vector<8x1xf32>
    %121 = math.rsqrt %120 : vector<8x1xf32>
    %122 = vector.broadcast %121 : vector<8x1xf32> to vector<8x256xf32>
    %123 = arith.mulf %113, %122 : vector<8x256xf32>
    %cst_57 = arith.constant 0.000000e+00 : f32
    %124 = vector.broadcast %cst_57 : f32 to vector<8x256xf32>
    %125 = arith.maximumf %123, %124 : vector<8x256xf32>
    %c0_58 = arith.constant 0 : index
    %c256_59 = arith.constant 256 : index
    %126 = vector.load %arg7[%c0_58, %c256_59] : memref<8x512xf32, #tpu.memory_space<vmem>>, vector<8x256xf32>
    tpu.vector_store %arg7[%c0_58, %c256_59], %125 {strides = array<i32>} : memref<8x512xf32, #tpu.memory_space<vmem>>, vector<8x256xf32>,
    %c0_60 = arith.constant 0 : index
    %c0_61 = arith.constant 0 : index
    %127 = vector.load %arg7[%c0_60, %c0_61] : memref<8x512xf32, #tpu.memory_space<vmem>>, vector<8x512xf32>
    %c17_i32_62 = arith.constant 17 : i32
    %128 = tpu.dynamic_rotate %127 by %c17_i32_62 dim 1 : vector<8x512xf32>, i32 -> vector<8x512xf32>
    %c0_63 = arith.constant 0 : index
    %c0_64 = arith.constant 0 : index
    %129 = vector.load %arg1[%c0_63, %c0_64] : memref<9x512xf32, #tpu.memory_space<vmem>>, vector<1x512xf32>
    %130 = vector.broadcast %129 : vector<1x512xf32> to vector<8x512xf32>
    %131 = arith.mulf %128, %130 : vector<8x512xf32>
    %c0_65 = arith.constant 0 : index
    %c0_66 = arith.constant 0 : index
    %132 = vector.load %arg8[%c0_65, %c0_66] : memref<72x512xf32, #tpu.memory_space<vmem>>, vector<8x512xf32>
    tpu.vector_store %arg8[%c0_65, %c0_66], %131 {strides = array<i32>} : memref<72x512xf32, #tpu.memory_space<vmem>>, vector<8x512xf32>,
    %c16_i32_67 = arith.constant 16 : i32
    %133 = tpu.dynamic_rotate %127 by %c16_i32_67 dim 1 : vector<8x512xf32>, i32 -> vector<8x512xf32>
    %c1_68 = arith.constant 1 : index
    %c0_69 = arith.constant 0 : index
    %134 = vector.load %arg1[%c1_68, %c0_69] : memref<9x512xf32, #tpu.memory_space<vmem>>, vector<1x512xf32>
    %135 = vector.broadcast %134 : vector<1x512xf32> to vector<8x512xf32>
    %136 = arith.mulf %133, %135 : vector<8x512xf32>
    %c8_70 = arith.constant 8 : index
    %c0_71 = arith.constant 0 : index
    %137 = vector.load %arg8[%c8_70, %c0_71] : memref<72x512xf32, #tpu.memory_space<vmem>>, vector<8x512xf32>
    tpu.vector_store %arg8[%c8_70, %c0_71], %136 {strides = array<i32>} : memref<72x512xf32, #tpu.memory_space<vmem>>, vector<8x512xf32>,
    %c15_i32_72 = arith.constant 15 : i32
    %138 = tpu.dynamic_rotate %127 by %c15_i32_72 dim 1 : vector<8x512xf32>, i32 -> vector<8x512xf32>
    %c2_73 = arith.constant 2 : index
    %c0_74 = arith.constant 0 : index
    %139 = vector.load %arg1[%c2_73, %c0_74] : memref<9x512xf32, #tpu.memory_space<vmem>>, vector<1x512xf32>
    %140 = vector.broadcast %139 : vector<1x512xf32> to vector<8x512xf32>
    %141 = arith.mulf %138, %140 : vector<8x512xf32>
    %c16_75 = arith.constant 16 : index
    %c0_76 = arith.constant 0 : index
    %142 = vector.load %arg8[%c16_75, %c0_76] : memref<72x512xf32, #tpu.memory_space<vmem>>, vector<8x512xf32>
    tpu.vector_store %arg8[%c16_75, %c0_76], %141 {strides = array<i32>} : memref<72x512xf32, #tpu.memory_space<vmem>>, vector<8x512xf32>,
    %c1_i32_77 = arith.constant 1 : i32
    %143 = tpu.dynamic_rotate %127 by %c1_i32_77 dim 1 : vector<8x512xf32>, i32 -> vector<8x512xf32>
    %c3_78 = arith.constant 3 : index
    %c0_79 = arith.constant 0 : index
    %144 = vector.load %arg1[%c3_78, %c0_79] : memref<9x512xf32, #tpu.memory_space<vmem>>, vector<1x512xf32>
    %145 = vector.broadcast %144 : vector<1x512xf32> to vector<8x512xf32>
    %146 = arith.mulf %143, %145 : vector<8x512xf32>
    %c24_80 = arith.constant 24 : index
    %c0_81 = arith.constant 0 : index
    %147 = vector.load %arg8[%c24_80, %c0_81] : memref<72x512xf32, #tpu.memory_space<vmem>>, vector<8x512xf32>
    tpu.vector_store %arg8[%c24_80, %c0_81], %146 {strides = array<i32>} : memref<72x512xf32, #tpu.memory_space<vmem>>, vector<8x512xf32>,
    %c32_82 = arith.constant 32 : index
    %c0_83 = arith.constant 0 : index
    %148 = vector.load %arg8[%c32_82, %c0_83] : memref<72x512xf32, #tpu.memory_space<vmem>>, vector<8x512xf32>
    tpu.vector_store %arg8[%c32_82, %c0_83], %127 {strides = array<i32>} : memref<72x512xf32, #tpu.memory_space<vmem>>, vector<8x512xf32>,
    %c511_i32_84 = arith.constant 511 : i32
    %149 = tpu.dynamic_rotate %127 by %c511_i32_84 dim 1 : vector<8x512xf32>, i32 -> vector<8x512xf32>
    %c5_85 = arith.constant 5 : index
    %c0_86 = arith.constant 0 : index
    %150 = vector.load %arg1[%c5_85, %c0_86] : memref<9x512xf32, #tpu.memory_space<vmem>>, vector<1x512xf32>
    %151 = vector.broadcast %150 : vector<1x512xf32> to vector<8x512xf32>
    %152 = arith.mulf %149, %151 : vector<8x512xf32>
    %c40_87 = arith.constant 40 : index
    %c0_88 = arith.constant 0 : index
    %153 = vector.load %arg8[%c40_87, %c0_88] : memref<72x512xf32, #tpu.memory_space<vmem>>, vector<8x512xf32>
    tpu.vector_store %arg8[%c40_87, %c0_88], %152 {strides = array<i32>} : memref<72x512xf32, #tpu.memory_space<vmem>>, vector<8x512xf32>,
    %c497_i32_89 = arith.constant 497 : i32
    %154 = tpu.dynamic_rotate %127 by %c497_i32_89 dim 1 : vector<8x512xf32>, i32 -> vector<8x512xf32>
    %c6_90 = arith.constant 6 : index
    %c0_91 = arith.constant 0 : index
    %155 = vector.load %arg1[%c6_90, %c0_91] : memref<9x512xf32, #tpu.memory_space<vmem>>, vector<1x512xf32>
    %156 = vector.broadcast %155 : vector<1x512xf32> to vector<8x512xf32>
    %157 = arith.mulf %154, %156 : vector<8x512xf32>
    %c48_92 = arith.constant 48 : index
    %c0_93 = arith.constant 0 : index
    %158 = vector.load %arg8[%c48_92, %c0_93] : memref<72x512xf32, #tpu.memory_space<vmem>>, vector<8x512xf32>
    tpu.vector_store %arg8[%c48_92, %c0_93], %157 {strides = array<i32>} : memref<72x512xf32, #tpu.memory_space<vmem>>, vector<8x512xf32>,
    %c496_i32_94 = arith.constant 496 : i32
    %159 = tpu.dynamic_rotate %127 by %c496_i32_94 dim 1 : vector<8x512xf32>, i32 -> vector<8x512xf32>
    %c7_95 = arith.constant 7 : index
    %c0_96 = arith.constant 0 : index
    %160 = vector.load %arg1[%c7_95, %c0_96] : memref<9x512xf32, #tpu.memory_space<vmem>>, vector<1x512xf32>
    %161 = vector.broadcast %160 : vector<1x512xf32> to vector<8x512xf32>
    %162 = arith.mulf %159, %161 : vector<8x512xf32>
    %c56_97 = arith.constant 56 : index
    %c0_98 = arith.constant 0 : index
    %163 = vector.load %arg8[%c56_97, %c0_98] : memref<72x512xf32, #tpu.memory_space<vmem>>, vector<8x512xf32>
    tpu.vector_store %arg8[%c56_97, %c0_98], %162 {strides = array<i32>} : memref<72x512xf32, #tpu.memory_space<vmem>>, vector<8x512xf32>,
    %c495_i32_99 = arith.constant 495 : i32
    %164 = tpu.dynamic_rotate %127 by %c495_i32_99 dim 1 : vector<8x512xf32>, i32 -> vector<8x512xf32>
    %c8_100 = arith.constant 8 : index
    %c0_101 = arith.constant 0 : index
    %165 = vector.load %arg1[%c8_100, %c0_101] : memref<9x512xf32, #tpu.memory_space<vmem>>, vector<1x512xf32>
    %166 = vector.broadcast %165 : vector<1x512xf32> to vector<8x512xf32>
    %167 = arith.mulf %164, %166 : vector<8x512xf32>
    %c64_102 = arith.constant 64 : index
    %c0_103 = arith.constant 0 : index
    %168 = vector.load %arg8[%c64_102, %c0_103] : memref<72x512xf32, #tpu.memory_space<vmem>>, vector<8x512xf32>
    tpu.vector_store %arg8[%c64_102, %c0_103], %167 {strides = array<i32>} : memref<72x512xf32, #tpu.memory_space<vmem>>, vector<8x512xf32>,
    %c0_104 = arith.constant 0 : index
    %c0_105 = arith.constant 0 : index
    %169 = vector.load %arg4[%c0_104, %c0_105] : memref<8x72xf32, #tpu.memory_space<vmem>>, vector<8x72xf32>
    %c0_106 = arith.constant 0 : index
    %c0_107 = arith.constant 0 : index
    %170 = vector.load %arg8[%c0_106, %c0_107] : memref<72x512xf32, #tpu.memory_space<vmem>>, vector<72x512xf32>
    %cst_108 = arith.constant dense<0.000000e+00> : vector<8x512xf32>
    %171 = tpu.matmul %169, %170, %cst_108 {dimension_numbers = #tpu.dot_dimension_numbers<[1], [0], [0], [1], [0, 0, 1, 1], [], []>} : vector<8x72xf32>, vector<72x512xf32>, vector<8x512xf32> -> vector<8x512xf32>
    %172 = vector.extract_strided_slice %171 {offsets = [0, 0], sizes = [8, 256], strides = [1, 1]} : vector<8x512xf32> to vector<8x256xf32>
    %cst_109 = arith.constant dense<0.000000e+00> : vector<8xf32>
    %173 = vector.multi_reduction <add>, %172, %cst_109 [1] : vector<8x256xf32> to vector<8xf32>
    %174 = vector.shape_cast %173 : vector<8xf32> to vector<8x1xf32>
    %cst_110 = arith.constant 2.560000e+02 : f32
    %175 = vector.broadcast %cst_110 : f32 to vector<8x1xf32>
    %176 = arith.divf %174, %175 : vector<8x1xf32>
    %177 = vector.broadcast %176 : vector<8x1xf32> to vector<8x256xf32>
    %178 = arith.subf %172, %177 : vector<8x256xf32>
    %179 = arith.mulf %178, %178 : vector<8x256xf32>
    %cst_111 = arith.constant dense<0.000000e+00> : vector<8xf32>
    %180 = vector.multi_reduction <add>, %179, %cst_111 [1] : vector<8x256xf32> to vector<8xf32>
    %181 = vector.shape_cast %180 : vector<8xf32> to vector<8x1xf32>
    %cst_112 = arith.constant 2.560000e+02 : f32
    %182 = vector.broadcast %cst_112 : f32 to vector<8x1xf32>
    %183 = arith.divf %181, %182 : vector<8x1xf32>
    %cst_113 = arith.constant 9.99999974E-6 : f32
    %184 = vector.broadcast %cst_113 : f32 to vector<8x1xf32>
    %185 = arith.addf %183, %184 : vector<8x1xf32>
    %186 = math.rsqrt %185 : vector<8x1xf32>
    %187 = vector.broadcast %186 : vector<8x1xf32> to vector<8x256xf32>
    %188 = arith.mulf %178, %187 : vector<8x256xf32>
    %cst_114 = arith.constant 0.000000e+00 : f32
    %189 = vector.broadcast %cst_114 : f32 to vector<8x256xf32>
    %190 = arith.maximumf %188, %189 : vector<8x256xf32>
    %c0_115 = arith.constant 0 : index
    %c0_116 = arith.constant 0 : index
    %191 = vector.load %arg7[%c0_115, %c0_116] : memref<8x512xf32, #tpu.memory_space<vmem>>, vector<8x256xf32>
    tpu.vector_store %arg7[%c0_115, %c0_116], %190 {strides = array<i32>} : memref<8x512xf32, #tpu.memory_space<vmem>>, vector<8x256xf32>,
    %192 = vector.extract_strided_slice %171 {offsets = [0, 256], sizes = [8, 256], strides = [1, 1]} : vector<8x512xf32> to vector<8x256xf32>
    %cst_117 = arith.constant dense<0.000000e+00> : vector<8xf32>
    %193 = vector.multi_reduction <add>, %192, %cst_117 [1] : vector<8x256xf32> to vector<8xf32>
    %194 = vector.shape_cast %193 : vector<8xf32> to vector<8x1xf32>
    %cst_118 = arith.constant 2.560000e+02 : f32
    %195 = vector.broadcast %cst_118 : f32 to vector<8x1xf32>
    %196 = arith.divf %194, %195 : vector<8x1xf32>
    %197 = vector.broadcast %196 : vector<8x1xf32> to vector<8x256xf32>
    %198 = arith.subf %192, %197 : vector<8x256xf32>
    %199 = arith.mulf %198, %198 : vector<8x256xf32>
    %cst_119 = arith.constant dense<0.000000e+00> : vector<8xf32>
    %200 = vector.multi_reduction <add>, %199, %cst_119 [1] : vector<8x256xf32> to vector<8xf32>
    %201 = vector.shape_cast %200 : vector<8xf32> to vector<8x1xf32>
    %cst_120 = arith.constant 2.560000e+02 : f32
    %202 = vector.broadcast %cst_120 : f32 to vector<8x1xf32>
    %203 = arith.divf %201, %202 : vector<8x1xf32>
    %cst_121 = arith.constant 9.99999974E-6 : f32
    %204 = vector.broadcast %cst_121 : f32 to vector<8x1xf32>
    %205 = arith.addf %203, %204 : vector<8x1xf32>
    %206 = math.rsqrt %205 : vector<8x1xf32>
    %207 = vector.broadcast %206 : vector<8x1xf32> to vector<8x256xf32>
    %208 = arith.mulf %198, %207 : vector<8x256xf32>
    %cst_122 = arith.constant 0.000000e+00 : f32
    %209 = vector.broadcast %cst_122 : f32 to vector<8x256xf32>
    %210 = arith.maximumf %208, %209 : vector<8x256xf32>
    %c0_123 = arith.constant 0 : index
    %c256_124 = arith.constant 256 : index
    %211 = vector.load %arg7[%c0_123, %c256_124] : memref<8x512xf32, #tpu.memory_space<vmem>>, vector<8x256xf32>
    tpu.vector_store %arg7[%c0_123, %c256_124], %210 {strides = array<i32>} : memref<8x512xf32, #tpu.memory_space<vmem>>, vector<8x256xf32>,
    %c0_125 = arith.constant 0 : index
    %c0_126 = arith.constant 0 : index
    %212 = vector.load %arg7[%c0_125, %c0_126] : memref<8x512xf32, #tpu.memory_space<vmem>>, vector<8x512xf32>
    %c17_i32_127 = arith.constant 17 : i32
    %213 = tpu.dynamic_rotate %212 by %c17_i32_127 dim 1 : vector<8x512xf32>, i32 -> vector<8x512xf32>
    %c0_128 = arith.constant 0 : index
    %c0_129 = arith.constant 0 : index
    %214 = vector.load %arg1[%c0_128, %c0_129] : memref<9x512xf32, #tpu.memory_space<vmem>>, vector<1x512xf32>
    %215 = vector.broadcast %214 : vector<1x512xf32> to vector<8x512xf32>
    %216 = arith.mulf %213, %215 : vector<8x512xf32>
    %c0_130 = arith.constant 0 : index
    %c0_131 = arith.constant 0 : index
    %217 = vector.load %arg8[%c0_130, %c0_131] : memref<72x512xf32, #tpu.memory_space<vmem>>, vector<8x512xf32>
    tpu.vector_store %arg8[%c0_130, %c0_131], %216 {strides = array<i32>} : memref<72x512xf32, #tpu.memory_space<vmem>>, vector<8x512xf32>,
    %c16_i32_132 = arith.constant 16 : i32
    %218 = tpu.dynamic_rotate %212 by %c16_i32_132 dim 1 : vector<8x512xf32>, i32 -> vector<8x512xf32>
    %c1_133 = arith.constant 1 : index
    %c0_134 = arith.constant 0 : index
    %219 = vector.load %arg1[%c1_133, %c0_134] : memref<9x512xf32, #tpu.memory_space<vmem>>, vector<1x512xf32>
    %220 = vector.broadcast %219 : vector<1x512xf32> to vector<8x512xf32>
    %221 = arith.mulf %218, %220 : vector<8x512xf32>
    %c8_135 = arith.constant 8 : index
    %c0_136 = arith.constant 0 : index
    %222 = vector.load %arg8[%c8_135, %c0_136] : memref<72x512xf32, #tpu.memory_space<vmem>>, vector<8x512xf32>
    tpu.vector_store %arg8[%c8_135, %c0_136], %221 {strides = array<i32>} : memref<72x512xf32, #tpu.memory_space<vmem>>, vector<8x512xf32>,
    %c15_i32_137 = arith.constant 15 : i32
    %223 = tpu.dynamic_rotate %212 by %c15_i32_137 dim 1 : vector<8x512xf32>, i32 -> vector<8x512xf32>
    %c2_138 = arith.constant 2 : index
    %c0_139 = arith.constant 0 : index
    %224 = vector.load %arg1[%c2_138, %c0_139] : memref<9x512xf32, #tpu.memory_space<vmem>>, vector<1x512xf32>
    %225 = vector.broadcast %224 : vector<1x512xf32> to vector<8x512xf32>
    %226 = arith.mulf %223, %225 : vector<8x512xf32>
    %c16_140 = arith.constant 16 : index
    %c0_141 = arith.constant 0 : index
    %227 = vector.load %arg8[%c16_140, %c0_141] : memref<72x512xf32, #tpu.memory_space<vmem>>, vector<8x512xf32>
    tpu.vector_store %arg8[%c16_140, %c0_141], %226 {strides = array<i32>} : memref<72x512xf32, #tpu.memory_space<vmem>>, vector<8x512xf32>,
    %c1_i32_142 = arith.constant 1 : i32
    %228 = tpu.dynamic_rotate %212 by %c1_i32_142 dim 1 : vector<8x512xf32>, i32 -> vector<8x512xf32>
    %c3_143 = arith.constant 3 : index
    %c0_144 = arith.constant 0 : index
    %229 = vector.load %arg1[%c3_143, %c0_144] : memref<9x512xf32, #tpu.memory_space<vmem>>, vector<1x512xf32>
    %230 = vector.broadcast %229 : vector<1x512xf32> to vector<8x512xf32>
    %231 = arith.mulf %228, %230 : vector<8x512xf32>
    %c24_145 = arith.constant 24 : index
    %c0_146 = arith.constant 0 : index
    %232 = vector.load %arg8[%c24_145, %c0_146] : memref<72x512xf32, #tpu.memory_space<vmem>>, vector<8x512xf32>
    tpu.vector_store %arg8[%c24_145, %c0_146], %231 {strides = array<i32>} : memref<72x512xf32, #tpu.memory_space<vmem>>, vector<8x512xf32>,
    %c32_147 = arith.constant 32 : index
    %c0_148 = arith.constant 0 : index
    %233 = vector.load %arg8[%c32_147, %c0_148] : memref<72x512xf32, #tpu.memory_space<vmem>>, vector<8x512xf32>
    tpu.vector_store %arg8[%c32_147, %c0_148], %212 {strides = array<i32>} : memref<72x512xf32, #tpu.memory_space<vmem>>, vector<8x512xf32>,
    %c511_i32_149 = arith.constant 511 : i32
    %234 = tpu.dynamic_rotate %212 by %c511_i32_149 dim 1 : vector<8x512xf32>, i32 -> vector<8x512xf32>
    %c5_150 = arith.constant 5 : index
    %c0_151 = arith.constant 0 : index
    %235 = vector.load %arg1[%c5_150, %c0_151] : memref<9x512xf32, #tpu.memory_space<vmem>>, vector<1x512xf32>
    %236 = vector.broadcast %235 : vector<1x512xf32> to vector<8x512xf32>
    %237 = arith.mulf %234, %236 : vector<8x512xf32>
    %c40_152 = arith.constant 40 : index
    %c0_153 = arith.constant 0 : index
    %238 = vector.load %arg8[%c40_152, %c0_153] : memref<72x512xf32, #tpu.memory_space<vmem>>, vector<8x512xf32>
    tpu.vector_store %arg8[%c40_152, %c0_153], %237 {strides = array<i32>} : memref<72x512xf32, #tpu.memory_space<vmem>>, vector<8x512xf32>,
    %c497_i32_154 = arith.constant 497 : i32
    %239 = tpu.dynamic_rotate %212 by %c497_i32_154 dim 1 : vector<8x512xf32>, i32 -> vector<8x512xf32>
    %c6_155 = arith.constant 6 : index
    %c0_156 = arith.constant 0 : index
    %240 = vector.load %arg1[%c6_155, %c0_156] : memref<9x512xf32, #tpu.memory_space<vmem>>, vector<1x512xf32>
    %241 = vector.broadcast %240 : vector<1x512xf32> to vector<8x512xf32>
    %242 = arith.mulf %239, %241 : vector<8x512xf32>
    %c48_157 = arith.constant 48 : index
    %c0_158 = arith.constant 0 : index
    %243 = vector.load %arg8[%c48_157, %c0_158] : memref<72x512xf32, #tpu.memory_space<vmem>>, vector<8x512xf32>
    tpu.vector_store %arg8[%c48_157, %c0_158], %242 {strides = array<i32>} : memref<72x512xf32, #tpu.memory_space<vmem>>, vector<8x512xf32>,
    %c496_i32_159 = arith.constant 496 : i32
    %244 = tpu.dynamic_rotate %212 by %c496_i32_159 dim 1 : vector<8x512xf32>, i32 -> vector<8x512xf32>
    %c7_160 = arith.constant 7 : index
    %c0_161 = arith.constant 0 : index
    %245 = vector.load %arg1[%c7_160, %c0_161] : memref<9x512xf32, #tpu.memory_space<vmem>>, vector<1x512xf32>
    %246 = vector.broadcast %245 : vector<1x512xf32> to vector<8x512xf32>
    %247 = arith.mulf %244, %246 : vector<8x512xf32>
    %c56_162 = arith.constant 56 : index
    %c0_163 = arith.constant 0 : index
    %248 = vector.load %arg8[%c56_162, %c0_163] : memref<72x512xf32, #tpu.memory_space<vmem>>, vector<8x512xf32>
    tpu.vector_store %arg8[%c56_162, %c0_163], %247 {strides = array<i32>} : memref<72x512xf32, #tpu.memory_space<vmem>>, vector<8x512xf32>,
    %c495_i32_164 = arith.constant 495 : i32
    %249 = tpu.dynamic_rotate %212 by %c495_i32_164 dim 1 : vector<8x512xf32>, i32 -> vector<8x512xf32>
    %c8_165 = arith.constant 8 : index
    %c0_166 = arith.constant 0 : index
    %250 = vector.load %arg1[%c8_165, %c0_166] : memref<9x512xf32, #tpu.memory_space<vmem>>, vector<1x512xf32>
    %251 = vector.broadcast %250 : vector<1x512xf32> to vector<8x512xf32>
    %252 = arith.mulf %249, %251 : vector<8x512xf32>
    %c64_167 = arith.constant 64 : index
    %c0_168 = arith.constant 0 : index
    %253 = vector.load %arg8[%c64_167, %c0_168] : memref<72x512xf32, #tpu.memory_space<vmem>>, vector<8x512xf32>
    tpu.vector_store %arg8[%c64_167, %c0_168], %252 {strides = array<i32>} : memref<72x512xf32, #tpu.memory_space<vmem>>, vector<8x512xf32>,
    %c0_169 = arith.constant 0 : index
    %c0_170 = arith.constant 0 : index
    %254 = vector.load %arg5[%c0_169, %c0_170] : memref<8x72xf32, #tpu.memory_space<vmem>>, vector<8x72xf32>
    %c0_171 = arith.constant 0 : index
    %c0_172 = arith.constant 0 : index
    %255 = vector.load %arg8[%c0_171, %c0_172] : memref<72x512xf32, #tpu.memory_space<vmem>>, vector<72x512xf32>
    %cst_173 = arith.constant dense<0.000000e+00> : vector<8x512xf32>
    %256 = tpu.matmul %254, %255, %cst_173 {dimension_numbers = #tpu.dot_dimension_numbers<[1], [0], [0], [1], [0, 0, 1, 1], [], []>} : vector<8x72xf32>, vector<72x512xf32>, vector<8x512xf32> -> vector<8x512xf32>
    %257 = vector.extract_strided_slice %171 {offsets = [0, 0], sizes = [4, 512], strides = [1, 1]} : vector<8x512xf32> to vector<4x512xf32>
    %258 = vector.extract_strided_slice %256 {offsets = [0, 0], sizes = [4, 512], strides = [1, 1]} : vector<8x512xf32> to vector<4x512xf32>
    %259 = tpu.concatenate %85, %257, %258 in 0 : vector<8x512xf32>, vector<4x512xf32>, vector<4x512xf32> -> vector<16x512xf32>
    %260 = arith.addf %259, %86 : vector<16x512xf32>
    %c0_174 = arith.constant 0 : index
    %c0_175 = arith.constant 0 : index
    %261 = vector.load %arg6[%c0_174, %c0_175] : memref<16x512xf32, #tpu.memory_space<vmem>>, vector<16x512xf32>
    tpu.vector_store %arg6[%c0_174, %c0_175], %260 {strides = array<i32>} : memref<16x512xf32, #tpu.memory_space<vmem>>, vector<16x512xf32>,
    return
  }
  func.func @transform_0(%arg0: i32) -> (i32, i32) {
    %c0_i32 = arith.constant 0 : i32
    %c0_i32_0 = arith.constant 0 : i32
    %c0_i32_1 = arith.constant 0 : i32
    return %c0_i32, %c0_i32_0 : i32, i32
  }
  func.func @transform_1(%arg0: i32) -> (i32, i32) {
    %c0_i32 = arith.constant 0 : i32
    %c0_i32_0 = arith.constant 0 : i32
    return %c0_i32, %arg0 : i32, i32
  }
  func.func @transform_2(%arg0: i32) -> (i32, i32) {
    %c0_i32 = arith.constant 0 : i32
    %c0_i32_0 = arith.constant 0 : i32
    %c0_i32_1 = arith.constant 0 : i32
    return %c0_i32, %c0_i32_0 : i32, i32
  }
  func.func @transform_3(%arg0: i32) -> (i32, i32) {
    %c0_i32 = arith.constant 0 : i32
    %c0_i32_0 = arith.constant 0 : i32
    %c0_i32_1 = arith.constant 0 : i32
    return %c0_i32, %c0_i32_0 : i32, i32
  }
  func.func @transform_4(%arg0: i32) -> (i32, i32) {
    %c0_i32 = arith.constant 0 : i32
    %c0_i32_0 = arith.constant 0 : i32
    %c0_i32_1 = arith.constant 0 : i32
    return %c0_i32, %c0_i32_0 : i32, i32
  }
  func.func @transform_5(%arg0: i32) -> (i32, i32) {
    %c0_i32 = arith.constant 0 : i32
    %c0_i32_0 = arith.constant 0 : i32
    return %c0_i32, %arg0 : i32, i32
  }
}

</mosaic_0001>

<llo_original>
// kernel: tpu_custom_call.1
$region0: #{tpu_custom_call.1}
  #allocation0 [shape = 'u32[]', space=smem, size = 0x4, offset = 0x4, fixed_abs, tag = 'smem constant byte address 0x4 - core index']
  #allocation1 [shape = 'u32[144,128]{1,0:T(1,128)}', space=vmem, size = 0x12000, scoped, tag = 'internal scratch']
  #allocation2 [shape = 'f32[8,512]{1,0:T(8,128)}', space=vmem, size = 0x4000, scoped, tag = 'scratch operand']
  #allocation3 [shape = 'f32[72,512]{1,0:T(8,128)}', space=vmem, size = 0x24000, scoped, tag = 'scratch operand']
  %s0 = inlined_call_operand.hbm [shape: f32[9,512], index: 0, kind: input, shape index: {}]
  %s1 = inlined_call_operand.hbm [shape: f32[8,1024], index: 1, kind: input, shape index: {}]
  %s2 = inlined_call_operand.hbm [shape: f32[24,72], index: 2, kind: input, shape index: {}]
  %s3 = inlined_call_operand.vmem [shape: f32[8,72], index: 3, kind: input, shape index: {}]
  %s4 = inlined_call_operand.hbm [shape: f32[8,72], index: 4, kind: input, shape index: {}]
  %s5 = inlined_call_operand.hbm [shape: f32[16,1024], index: 5, kind: output, shape index: {}]
  %s6 = sld [smem:[#allocation0]]
  $region69: #{tpu_custom_call.1} parent=0
    _
  %s8 = ssub.s32 1, %s6
  %s9 = scalar_select 0, %s8, %s6
  $region1: #{tpu_custom_call.1} parent=0
    #allocation4 [shape = 'u8[32768]{0}', space=vmem, size = 0x8000, scoped, tag = 'input window, operand 0, single buffered']
    #allocation5 [shape = 's32[2]{0}', space=sflag, size = 0x8, scoped, tag = 'scoped memory for tpu_custom_call.1']
    #allocation6 [shape = 's32[2]{0}', space=sflag, size = 0x8, scoped, tag = 'scoped memory for tpu_custom_call.1']
    #allocation7 [shape = 'u8[32768]{0}', space=vmem, size = 0x8000, scoped, tag = 'input window, operand 1']
    #allocation8 [shape = 's32[2]{0}', space=sflag, size = 0x8, scoped, tag = 'scoped memory for tpu_custom_call.1']
    #allocation9 [shape = 'u8[12288]{0}', space=vmem, size = 0x3000, scoped, tag = 'input window, operand 2, single buffered']
    #allocation10 [shape = 'u8[4096]{0}', space=vmem, size = 0x1000, scoped, tag = 'input window, operand 4, single buffered']
    #allocation11 [shape = 's32[1]{0}', space=sflag, size = 0x4, scoped, tag = 'scoped memory for tpu_custom_call.1']
    #allocation12 [shape = 'u8[65536]{0}', space=vmem, size = 0x10000, scoped, tag = 'output window, operand 0']
    %10 = vsyncpa [#allocation5], 0
    %11 = vsyncpa [#allocation8], 0
    %s12 = scalar_lea.sflag [#allocation8], 1
    %13 = vsyncpa %s12, 0
    %14 = vsyncpa [#allocation11], 0
    %15 = vsyncpa [#allocation6], 0
    %s16 = scalar_lea.sflag [#allocation6], 1
    %17 = vsyncpa %s16, 0
    loop: start=0, step=1, limit=4
    $region2: #{tpu_custom_call.1} parent=1 // loop_pre_header
      _
    $region3: #{tpu_custom_call.1} parent=1 // loop_header
      %s19 = sphi 0, %s23
      %p20 = scmp.ge.s32.totalorder %s19, 4
      %s27 = sphi 0, %s27
      %s29 = sphi 0, %s27
      %s30 = sphi 0, %s29
      %s44 = sphi 0, %s30
      %s50 = sphi 0, %s52
      %s53 = sphi 0, %s50
      %s54 = sphi 0, %s53
      %s70 = sphi 0, %s54
      %s74 = sphi 0, %s74
      %s76 = sphi 0, %s74
      %s77 = sphi 0, %s76
      %s91 = sphi 0, %s77
      %s95 = sphi 0, %s95
      %s97 = sphi 0, %s95
      %s98 = sphi 0, %s97
      %s112 = sphi 0, %s98
      %s116 = sphi 0, %s116
      %s118 = sphi 0, %s116
      %s119 = sphi 0, %s118
      %s133 = sphi 0, %s119
      %s139 = sphi 0, %s141
      %s142 = sphi 0, %s139
      %s143 = sphi 0, %s142
      %s159 = sphi 0, %s143
    $region4: #{tpu_custom_call.1} parent=1 // loop_header_branch
      %22 = sbr.rel (%p20) target = $region8
    $region5: #{tpu_custom_call.1} parent=1 // loop_body
      %s24 = ssub.s32 %s19, 1
      %s25 = ssub.s32 %s19, 2
      %s26 = sadd.s32 %s19, 1
      %s28 = sadd.s32 %s27, 1
      %p31 = scmp.eq.s32.totalorder %s19, 1
      %p32 = scmp.ne.s32.totalorder %s27, %s29
      %p33 = scmp.eq.s32.totalorder %s19, 0
      %p34 = por %p32, %p33
      %p35 = scmp.ne.s32.totalorder %s27, %s29
      %p36 = scmp.eq.s32.totalorder %s24, 1
      %p37 = por %p35, %p36
      %p38 = scmp.ne.s32.totalorder %s29, %s30
      %p39 = scmp.eq.s32.totalorder %s24, 0
      %p40 = por %p38, %p39
      %p41 = scmp.ne.s32.totalorder %s29, %s30
      %p42 = scmp.eq.s32.totalorder %s25, 1
      %p43 = por %p41, %p42
      %p45 = scmp.ne.s32.totalorder %s30, %s44
      %p46 = scmp.eq.s32.totalorder %s25, 0
      %p47 = por %p45, %p46
      %s48 = ssub.s32 %s19, %s26
      %p49 = scmp.eq.s32.totalorder %s48, 0
      %s51 = sadd.s32 %s50, 1
      %s52 = scalar_select %p49, %s50, %s51
      %p55 = pneg %p49
      %p56 = scmp.eq.s32.totalorder %s19, 1
      %p57 = por %p55, %p56
      %p58 = scmp.ne.s32.totalorder %s50, %s53
      %p59 = scmp.eq.s32.totalorder %s19, 0
      %p60 = por %p58, %p59
      %p61 = scmp.ne.s32.totalorder %s50, %s53
      %p62 = scmp.eq.s32.totalorder %s24, 1
      %p63 = por %p61, %p62
      %p64 = scmp.ne.s32.totalorder %s53, %s54
      %p65 = scmp.eq.s32.totalorder %s24, 0
      %p66 = por %p64, %p65
      %p67 = scmp.ne.s32.totalorder %s53, %s54
      %p68 = scmp.eq.s32.totalorder %s25, 1
      %p69 = por %p67, %p68
      %p71 = scmp.ne.s32.totalorder %s54, %s70
      %p72 = scmp.eq.s32.totalorder %s25, 0
      %p73 = por %p71, %p72
      %s75 = sadd.s32 %s74, 1
      %p78 = scmp.eq.s32.totalorder %s19, 1
      %p79 = scmp.ne.s32.totalorder %s74, %s76
      %p80 = scmp.eq.s32.totalorder %s19, 0
      %p81 = por %p79, %p80
      %p82 = scmp.ne.s32.totalorder %s74, %s76
      %p83 = scmp.eq.s32.totalorder %s24, 1
      %p84 = por %p82, %p83
      %p85 = scmp.ne.s32.totalorder %s76, %s77
      %p86 = scmp.eq.s32.totalorder %s24, 0
      %p87 = por %p85, %p86
      %p88 = scmp.ne.s32.totalorder %s76, %s77
      %p89 = scmp.eq.s32.totalorder %s25, 1
      %p90 = por %p88, %p89
      %p92 = scmp.ne.s32.totalorder %s77, %s91
      %p93 = scmp.eq.s32.totalorder %s25, 0
      %p94 = por %p92, %p93
      %s96 = sadd.s32 %s95, 1
      %p99 = scmp.eq.s32.totalorder %s19, 1
      %p100 = scmp.ne.s32.totalorder %s95, %s97
      %p101 = scmp.eq.s32.totalorder %s19, 0
      %p102 = por %p100, %p101
      %p103 = scmp.ne.s32.totalorder %s95, %s97
      %p104 = scmp.eq.s32.totalorder %s24, 1
      %p105 = por %p103, %p104
      %p106 = scmp.ne.s32.totalorder %s97, %s98
      %p107 = scmp.eq.s32.totalorder %s24, 0
      %p108 = por %p106, %p107
      %p109 = scmp.ne.s32.totalorder %s97, %s98
      %p110 = scmp.eq.s32.totalorder %s25, 1
      %p111 = por %p109, %p110
      %p113 = scmp.ne.s32.totalorder %s98, %s112
      %p114 = scmp.eq.s32.totalorder %s25, 0
      %p115 = por %p113, %p114
      %s117 = sadd.s32 %s116, 1
      %p120 = scmp.eq.s32.totalorder %s19, 1
      %p121 = scmp.ne.s32.totalorder %s116, %s118
      %p122 = scmp.eq.s32.totalorder %s19, 0
      %p123 = por %p121, %p122
      %p124 = scmp.ne.s32.totalorder %s116, %s118
      %p125 = scmp.eq.s32.totalorder %s24, 1
      %p126 = por %p124, %p125
      %p127 = scmp.ne.s32.totalorder %s118, %s119
      %p128 = scmp.eq.s32.totalorder %s24, 0
      %p129 = por %p127, %p128
      %p130 = scmp.ne.s32.totalorder %s118, %s119
      %p131 = scmp.eq.s32.totalorder %s25, 1
      %p132 = por %p130, %p131
      %p134 = scmp.ne.s32.totalorder %s119, %s133
      %p135 = scmp.eq.s32.totalorder %s25, 0
      %p136 = por %p134, %p135
      %s137 = ssub.s32 %s19, %s26
      %p138 = scmp.eq.s32.totalorder %s137, 0
      %s140 = sadd.s32 %s139, 1
      %s141 = scalar_select %p138, %s139, %s140
      %p144 = pneg %p138
      %p145 = scmp.eq.s32.totalorder %s19, 1
      %p146 = por %p144, %p145
      %p147 = scmp.ne.s32.totalorder %s139, %s142
      %p148 = scmp.eq.s32.totalorder %s19, 0
      %p149 = por %p147, %p148
      %p150 = scmp.ne.s32.totalorder %s139, %s142
      %p151 = scmp.eq.s32.totalorder %s24, 1
      %p152 = por %p150, %p151
      %p153 = scmp.ne.s32.totalorder %s142, %s143
      %p154 = scmp.eq.s32.totalorder %s24, 0
      %p155 = por %p153, %p154
      %p156 = scmp.ne.s32.totalorder %s142, %s143
      %p157 = scmp.eq.s32.totalorder %s25, 1
      %p158 = por %p156, %p157
      %p160 = scmp.ne.s32.totalorder %s143, %s159
      %p161 = scmp.eq.s32.totalorder %s25, 0
      %p162 = por %p160, %p161
      %p163 = scmp.le.s32.totalorder 1, %s19
      %p164 = scmp.lt.s32.totalorder %s19, 3
      %p165 = pnand %p163, %p164
      %p166 = pneg %p165
      // Predicated region
      $region9: #{tpu_custom_call.1} parent=5 // pred_check
        _
      $region10: #{tpu_custom_call.1} parent=5 // pred_check_branch
        %168 = sbr.rel (%p165) target = $region12
      $region11: #{tpu_custom_call.1} parent=5 // pred_region
        %s169 = ssub.s32 %s19, 1
        // Predicated region
        $region13: #{tpu_custom_call.1} parent=11 // pred_check
          %p170 = pneg %p40
        $region14: #{tpu_custom_call.1} parent=11 // pred_check_branch
          %172 = sbr.rel (%p170) target = $region16
        $region15: #{tpu_custom_call.1} parent=11 // pred_region
          %s174 = ssub.s32 1024, 1024
          %175 = vsyncadd [#allocation5], %s174
          %s176 = sshll.u32 [#allocation4], 4
          %s177 = int_to_ptr.vmem [resolvable:$true] %s176
          %182 = dma.hbm_to_vmem [thread:$0]  %s0, 1024, %s177, [#allocation5], 512, 512, 32
        $region16: #{tpu_custom_call.1} parent=11 // pred_fallthru
          _
        // Predicated region
        $region17: #{tpu_custom_call.1} parent=11 // pred_check
          %p183 = pneg %p87
        $region18: #{tpu_custom_call.1} parent=11 // pred_check_branch
          %185 = sbr.rel (%p183) target = $region20
        $region19: #{tpu_custom_call.1} parent=11 // pred_region
          %s187 = ssub.s32 384, 384
          %188 = vsyncadd [#allocation8], %s187
          %s189 = sshll.u32 [#allocation9], 4
          %s190 = int_to_ptr.vmem [resolvable:$true] %s189
          %195 = dma.hbm_to_vmem [thread:$0]  %s2, 384, %s190, [#allocation8], 128, 128, 8
        $region20: #{tpu_custom_call.1} parent=11 // pred_fallthru
          _
        // Predicated region
        $region21: #{tpu_custom_call.1} parent=11 // pred_check
          %p196 = pneg %p108
        $region22: #{tpu_custom_call.1} parent=11 // pred_check_branch
          %198 = sbr.rel (%p196) target = $region24
        $region23: #{tpu_custom_call.1} parent=11 // pred_region
          _
        $region24: #{tpu_custom_call.1} parent=11 // pred_fallthru
          _
        // Predicated region
        $region25: #{tpu_custom_call.1} parent=11 // pred_check
          %p199 = pneg %p129
        $region26: #{tpu_custom_call.1} parent=11 // pred_check_branch
          %201 = sbr.rel (%p199) target = $region28
        $region27: #{tpu_custom_call.1} parent=11 // pred_region
          %s203 = ssub.s32 128, 128
          %204 = vsyncadd [#allocation11], %s203
          %s206 = sshll.u32 [#allocation10], 4
          %s207 = int_to_ptr.vmem [resolvable:$true] %s206
          %209 = dma.hbm_to_vmem [thread:$0]  %s4, 128, %s207, [#allocation11]
        $region28: #{tpu_custom_call.1} parent=11 // pred_fallthru
          _
      $region12: #{tpu_custom_call.1} parent=5 // pred_fallthru
        _
      %p210 = scmp.lt.s32.totalorder %s19, 2
      // Predicated region
      $region29: #{tpu_custom_call.1} parent=5 // pred_check
        %p211 = pneg %p210
      $region30: #{tpu_custom_call.1} parent=5 // pred_check_branch
        %213 = sbr.rel (%p211) target = $region32
      $region31: #{tpu_custom_call.1} parent=5 // pred_region
        // Predicated region
        $region33: #{tpu_custom_call.1} parent=31 // pred_check
          %p214 = pneg %p60
        $region34: #{tpu_custom_call.1} parent=31 // pred_check_branch
          %216 = sbr.rel (%p214) target = $region36
        $region35: #{tpu_custom_call.1} parent=31 // pred_region
          %s217 = sand.u32 %s19, 1
          %s218 = scalar_lea.sflag [#allocation8], %s217
          %s219 = sand.u32 %s50, 1
          %s220 = smul.addr %s219, 32
          %s221 = scalar_lea.vmem [#allocation7], %s220
          %s222 = smul.u32 4, %s19
          %s224 = ssub.s32 512, 512
          %225 = vsyncadd %s218, %s224
          %s226 = smul.addr %s222, 128
          %s227 = scalar_lea.hbm %s1, %s226
          %s229 = sshll.u32 %s221, 4
          %s230 = int_to_ptr.vmem [resolvable:$true] %s229
          %232 = dma.hbm_to_vmem [thread:$0]  %s227, 512, %s230, %s218
        $region36: #{tpu_custom_call.1} parent=31 // pred_fallthru
          _
      $region32: #{tpu_custom_call.1} parent=5 // pred_fallthru
        _
      %p233 = scmp.le.s32.totalorder 1, %s19
      %p234 = scmp.lt.s32.totalorder %s19, 3
      %p235 = pnand %p233, %p234
      %p236 = pneg %p235
      // Predicated region
      $region37: #{tpu_custom_call.1} parent=5 // pred_check
        _
      $region38: #{tpu_custom_call.1} parent=5 // pred_check_branch
        %238 = sbr.rel (%p235) target = $region40
      $region39: #{tpu_custom_call.1} parent=5 // pred_region
        %s239 = ssub.s32 %s19, 1
        // Predicated region
        $region41: #{tpu_custom_call.1} parent=39 // pred_check
          %p240 = pneg %p40
        $region42: #{tpu_custom_call.1} parent=39 // pred_check_branch
          %242 = sbr.rel (%p240) target = $region44
        $region43: #{tpu_custom_call.1} parent=39 // pred_region
          %243 = dma.done [#allocation5], 1024
        $region44: #{tpu_custom_call.1} parent=39 // pred_fallthru
          _
        %s244 = sand.u32 %s24, 1
        %s245 = scalar_lea.sflag [#allocation8], %s244
        %s246 = sand.u32 %s53, 1
        %s247 = smul.addr %s246, 32
        %s248 = scalar_lea.vmem [#allocation7], %s247
        // Predicated region
        $region45: #{tpu_custom_call.1} parent=39 // pred_check
          %p249 = pneg %p66
        $region46: #{tpu_custom_call.1} parent=39 // pred_check_branch
          %251 = sbr.rel (%p249) target = $region48
        $region47: #{tpu_custom_call.1} parent=39 // pred_region
          %252 = dma.done %s245, 512
        $region48: #{tpu_custom_call.1} parent=39 // pred_fallthru
          _
        // Predicated region
        $region49: #{tpu_custom_call.1} parent=39 // pred_check
          %p253 = pneg %p87
        $region50: #{tpu_custom_call.1} parent=39 // pred_check_branch
          %255 = sbr.rel (%p253) target = $region52
        $region51: #{tpu_custom_call.1} parent=39 // pred_region
          %256 = dma.done [#allocation8], 384
        $region52: #{tpu_custom_call.1} parent=39 // pred_fallthru
          _
        // Predicated region
        $region53: #{tpu_custom_call.1} parent=39 // pred_check
          %p257 = pneg %p129
        $region54: #{tpu_custom_call.1} parent=39 // pred_check_branch
          %259 = sbr.rel (%p257) target = $region56
        $region55: #{tpu_custom_call.1} parent=39 // pred_region
          %260 = dma.done [#allocation11], 128
        $region56: #{tpu_custom_call.1} parent=39 // pred_fallthru
          _
        %p261 = pneg %p40
        %p262 = pneg %p37
        %s263 = sand.u32 %s24, 1
        %s264 = scalar_lea.sflag [#allocation8], %s263
        %s265 = sand.u32 %s53, 1
        %s266 = smul.addr %s265, 32
        %s267 = scalar_lea.vmem [#allocation7], %s266
        %p268 = pneg %p66
        %p269 = pneg %p63
        %p270 = pneg %p87
        %p271 = pneg %p84
        %p272 = pneg %p108
        %p273 = pneg %p105
        %p274 = pneg %p129
        %p275 = pneg %p126
        %p276 = pneg %p155
        %p277 = pneg %p152
        %s278 = sand.u32 %s142, 1
        %s279 = scalar_lea.sflag [#allocation6], %s278
        %s280 = sand.u32 %s142, 1
        %s281 = smul.addr %s280, 64
        %s282 = scalar_lea.vmem [#allocation12], %s281
        %s283 = smul.u32 4, %s24
        %s284 = smul.u32 4, %s24
        %v285 = vld [vmem:[%s248] sm:$0xff]
        %v286 = vld [vmem:[%s248 + $0x8] sm:$0xff]
        %v287 = vadd.f32 %v285, %v286
        %288 = vadd.xlane.f32.xlu0 %v287
        %v289 = vpop.xlane.xlu0 %288
        %v290 = vrcp.pop 256.0
        %v291 = vmul.f32 %v289, %v290
        %v292 = vsub.f32 %v285, %v291
        %v293 = vsub.f32 %v286, %v291
        %v294 = vmul.f32 %v292, %v292
        %v295 = vmul.f32 %v293, %v293
        %v296 = vadd.f32 %v294, %v295
        %297 = vadd.xlane.f32.xlu0 %v296
        %v298 = vpop.xlane.xlu0 %297
        %v299 = vmul.f32 %v298, %v290
        %v300 = vadd.f32 %v299, 1e-05
        %v301 = vrsqrt.pop %v300
        %v302 = vmul.f32 %v292, %v301
        %v303 = vmul.f32 %v293, %v301
        %v304 = vmax.f32 %v302, 0.0
        %v305 = vmax.f32 %v303, 0.0
        %306 = vst [vmem:[#allocation2] sm:$0xff] %v304
        %307 = vst [vmem:[#allocation2 + $0x8] sm:$0xff] %v305
        %v308 = vld [vmem:[%s248 + $0x10] sm:$0xff]
        %v309 = vld [vmem:[%s248 + $0x18] sm:$0xff]
        %v310 = vadd.f32 %v308, %v309
        %311 = vadd.xlane.f32.xlu0 %v310
        %v312 = vpop.xlane.xlu0 %311
        %v313 = vmul.f32 %v312, %v290
        %v314 = vsub.f32 %v308, %v313
        %v315 = vsub.f32 %v309, %v313
        %v316 = vmul.f32 %v314, %v314
        %v317 = vmul.f32 %v315, %v315
        %v318 = vadd.f32 %v316, %v317
        %319 = vadd.xlane.f32.xlu0 %v318
        %v320 = vpop.xlane.xlu0 %319
        %v321 = vmul.f32 %v320, %v290
        %v322 = vadd.f32 %v321, 1e-05
        %v323 = vrsqrt.pop %v322
        %v324 = vmul.f32 %v314, %v323
        %v325 = vmul.f32 %v315, %v323
        %v326 = vmax.f32 %v324, 0.0
        %v327 = vmax.f32 %v325, 0.0
        %328 = vst [vmem:[#allocation2 + $0x10] sm:$0xff] %v326
        %329 = vst [vmem:[#allocation2 + $0x18] sm:$0xff] %v327
        %v330 = vld [vmem:[#allocation2] sm:$0xff]
        %v331 = vld [vmem:[#allocation2 + $0x8] sm:$0xff]
        %v332 = vld [vmem:[#allocation2 + $0x10] sm:$0xff]
        %v333 = vld [vmem:[#allocation2 + $0x18] sm:$0xff]
        %334 = vrot.lane.b32.xlu0 %v330, 17
        %v335 = vpop.permute.xlu0 %334
        %336 = vrot.lane.b32.xlu0 %v331, 17
        %v337 = vpop.permute.xlu0 %336
        %338 = vrot.lane.b32.xlu0 %v332, 17
        %v339 = vpop.permute.xlu0 %338
        %340 = vrot.lane.b32.xlu0 %v333, 17
        %v341 = vpop.permute.xlu0 %340
        %v342 = vlaneseq
        %v343 = vand.u32 %v342, 127
        %vm344 = vcmp.lt.s32.totalorder %v343, 17
        %v345 = vsel %vm344, %v339, %v341
        %v346 = vsel %vm344, %v337, %v339
        %v347 = vsel %vm344, %v335, %v337
        %v348 = vsel %vm344, %v341, %v335
        %v349 = vld [vmem:[#allocation4] ss:$8 sm:$0xf]
        %v351 = vlaneseq
        %v352 = vshrl.u32 %v351, 7
        %v353 = vsub.s32 0, %v352
        %v354 = vrot.slane %v349, %v353
        %v355 = vlaneseq
        %v356 = vshrl.u32 %v355, 7
        %v357 = vsub.s32 1, %v356
        %v358 = vrot.slane %v349, %v357
        %v359 = vlaneseq
        %v360 = vshrl.u32 %v359, 7
        %v361 = vsub.s32 2, %v360
        %v362 = vrot.slane %v349, %v361
        %v363 = vlaneseq
        %v364 = vshrl.u32 %v363, 7
        %v365 = vsub.s32 3, %v364
        %v366 = vrot.slane %v349, %v365
        %v371 = vmul.f32 %v348, %v354
        %v372 = vmul.f32 %v347, %v358
        %v373 = vmul.f32 %v346, %v362
        %v374 = vmul.f32 %v345, %v366
        %375 = vst [vmem:[#allocation3] sm:$0xff] %v371
        %376 = vst [vmem:[#allocation3 + $0x8] sm:$0xff] %v372
        %377 = vst [vmem:[#allocation3 + $0x10] sm:$0xff] %v373
        %378 = vst [vmem:[#allocation3 + $0x18] sm:$0xff] %v374
        %379 = vrot.lane.b32.xlu0 %v330, 16
        %v380 = vpop.permute.xlu0 %379
        %381 = vrot.lane.b32.xlu0 %v331, 16
        %v382 = vpop.permute.xlu0 %381
        %383 = vrot.lane.b32.xlu0 %v332, 16
        %v384 = vpop.permute.xlu0 %383
        %385 = vrot.lane.b32.xlu0 %v333, 16
        %v386 = vpop.permute.xlu0 %385
        %vm387 = vcmp.lt.s32.totalorder %v343, 16
        %v388 = vsel %vm387, %v384, %v386
        %v389 = vsel %vm387, %v382, %v384
        %v390 = vsel %vm387, %v380, %v382
        %v391 = vsel %vm387, %v386, %v380
        %s392 = scalar_lea.vmem [#allocation4], 1
        %v393 = vld [vmem:[%s392] ss:$8 sm:$0xf]
        %v395 = vlaneseq
        %v396 = vshrl.u32 %v395, 7
        %v397 = vsub.s32 0, %v396
        %v398 = vrot.slane %v393, %v397
        %v399 = vlaneseq
        %v400 = vshrl.u32 %v399, 7
        %v401 = vsub.s32 1, %v400
        %v402 = vrot.slane %v393, %v401
        %v403 = vlaneseq
        %v404 = vshrl.u32 %v403, 7
        %v405 = vsub.s32 2, %v404
        %v406 = vrot.slane %v393, %v405
        %v407 = vlaneseq
        %v408 = vshrl.u32 %v407, 7
        %v409 = vsub.s32 3, %v408
        %v410 = vrot.slane %v393, %v409
        %v415 = vmul.f32 %v391, %v398
        %v416 = vmul.f32 %v390, %v402
        %v417 = vmul.f32 %v389, %v406
        %v418 = vmul.f32 %v388, %v410
        %419 = vst [vmem:[#allocation3 + $0x20] sm:$0xff] %v415
        %420 = vst [vmem:[#allocation3 + $0x28] sm:$0xff] %v416
        %421 = vst [vmem:[#allocation3 + $0x30] sm:$0xff] %v417
        %422 = vst [vmem:[#allocation3 + $0x38] sm:$0xff] %v418
        %423 = vrot.lane.b32.xlu0 %v330, 15
        %v424 = vpop.permute.xlu0 %423
        %425 = vrot.lane.b32.xlu0 %v331, 15
        %v426 = vpop.permute.xlu0 %425
        %427 = vrot.lane.b32.xlu0 %v332, 15
        %v428 = vpop.permute.xlu0 %427
        %429 = vrot.lane.b32.xlu0 %v333, 15
        %v430 = vpop.permute.xlu0 %429
        %vm431 = vcmp.lt.s32.totalorder %v343, 15
        %v432 = vsel %vm431, %v428, %v430
        %v433 = vsel %vm431, %v426, %v428
        %v434 = vsel %vm431, %v424, %v426
        %v435 = vsel %vm431, %v430, %v424
        %s436 = scalar_lea.vmem [#allocation4], 2
        %v437 = vld [vmem:[%s436] ss:$8 sm:$0xf]
        %v439 = vlaneseq
        %v440 = vshrl.u32 %v439, 7
        %v441 = vsub.s32 0, %v440
        %v442 = vrot.slane %v437, %v441
        %v443 = vlaneseq
        %v444 = vshrl.u32 %v443, 7
        %v445 = vsub.s32 1, %v444
        %v446 = vrot.slane %v437, %v445
        %v447 = vlaneseq
        %v448 = vshrl.u32 %v447, 7
        %v449 = vsub.s32 2, %v448
        %v450 = vrot.slane %v437, %v449
        %v451 = vlaneseq
        %v452 = vshrl.u32 %v451, 7
        %v453 = vsub.s32 3, %v452
        %v454 = vrot.slane %v437, %v453
        %v459 = vmul.f32 %v435, %v442
        %v460 = vmul.f32 %v434, %v446
        %v461 = vmul.f32 %v433, %v450
        %v462 = vmul.f32 %v432, %v454
        %463 = vst [vmem:[#allocation3 + $0x40] sm:$0xff] %v459
        %464 = vst [vmem:[#allocation3 + $0x48] sm:$0xff] %v460
        %465 = vst [vmem:[#allocation3 + $0x50] sm:$0xff] %v461
        %466 = vst [vmem:[#allocation3 + $0x58] sm:$0xff] %v462
        %467 = vrot.lane.b32.xlu0 %v330, 1
        %v468 = vpop.permute.xlu0 %467
        %469 = vrot.lane.b32.xlu0 %v331, 1
        %v470 = vpop.permute.xlu0 %469
        %471 = vrot.lane.b32.xlu0 %v332, 1
        %v472 = vpop.permute.xlu0 %471
        %473 = vrot.lane.b32.xlu0 %v333, 1
        %v474 = vpop.permute.xlu0 %473
        %vm475 = vcmp.lt.s32.totalorder %v343, 1
        %v476 = vsel %vm475, %v472, %v474
        %v477 = vsel %vm475, %v470, %v472
        %v478 = vsel %vm475, %v468, %v470
        %v479 = vsel %vm475, %v474, %v468
        %s480 = scalar_lea.vmem [#allocation4], 3
        %v481 = vld [vmem:[%s480] ss:$8 sm:$0xf]
        %v483 = vlaneseq
        %v484 = vshrl.u32 %v483, 7
        %v485 = vsub.s32 0, %v484
        %v486 = vrot.slane %v481, %v485
        %v487 = vlaneseq
        %v488 = vshrl.u32 %v487, 7
        %v489 = vsub.s32 1, %v488
        %v490 = vrot.slane %v481, %v489
        %v491 = vlaneseq
        %v492 = vshrl.u32 %v491, 7
        %v493 = vsub.s32 2, %v492
        %v494 = vrot.slane %v481, %v493
        %v495 = vlaneseq
        %v496 = vshrl.u32 %v495, 7
        %v497 = vsub.s32 3, %v496
        %v498 = vrot.slane %v481, %v497
        %v503 = vmul.f32 %v479, %v486
        %v504 = vmul.f32 %v478, %v490
        %v505 = vmul.f32 %v477, %v494
        %v506 = vmul.f32 %v476, %v498
        %507 = vst [vmem:[#allocation3 + $0x60] sm:$0xff] %v503
        %508 = vst [vmem:[#allocation3 + $0x68] sm:$0xff] %v504
        %509 = vst [vmem:[#allocation3 + $0x70] sm:$0xff] %v505
        %510 = vst [vmem:[#allocation3 + $0x78] sm:$0xff] %v506
        %511 = vst [vmem:[#allocation3 + $0x80] sm:$0xff] %v330
        %512 = vst [vmem:[#allocation3 + $0x88] sm:$0xff] %v331
        %513 = vst [vmem:[#allocation3 + $0x90] sm:$0xff] %v332
        %514 = vst [vmem:[#allocation3 + $0x98] sm:$0xff] %v333
        %515 = vrot.lane.b32.xlu0 %v330, 127
        %v516 = vpop.permute.xlu0 %515
        %517 = vrot.lane.b32.xlu0 %v331, 127
        %v518 = vpop.permute.xlu0 %517
        %519 = vrot.lane.b32.xlu0 %v332, 127
        %v520 = vpop.permute.xlu0 %519
        %521 = vrot.lane.b32.xlu0 %v333, 127
        %v522 = vpop.permute.xlu0 %521
        %vm523 = vcmp.lt.s32.totalorder %v343, 127
        %v524 = vsel %vm523, %v520, %v522
        %v525 = vsel %vm523, %v518, %v520
        %v526 = vsel %vm523, %v516, %v518
        %v527 = vsel %vm523, %v522, %v516
        %s528 = scalar_lea.vmem [#allocation4], 5
        %v529 = vld [vmem:[%s528] ss:$8 sm:$0xf]
        %v531 = vlaneseq
        %v532 = vshrl.u32 %v531, 7
        %v533 = vsub.s32 0, %v532
        %v534 = vrot.slane %v529, %v533
        %v535 = vlaneseq
        %v536 = vshrl.u32 %v535, 7
        %v537 = vsub.s32 1, %v536
        %v538 = vrot.slane %v529, %v537
        %v539 = vlaneseq
        %v540 = vshrl.u32 %v539, 7
        %v541 = vsub.s32 2, %v540
        %v542 = vrot.slane %v529, %v541
        %v543 = vlaneseq
        %v544 = vshrl.u32 %v543, 7
        %v545 = vsub.s32 3, %v544
        %v546 = vrot.slane %v529, %v545
        %v551 = vmul.f32 %v526, %v534
        %v552 = vmul.f32 %v525, %v538
        %v553 = vmul.f32 %v524, %v542
        %v554 = vmul.f32 %v527, %v546
        %555 = vst [vmem:[#allocation3 + $0xa0] sm:$0xff] %v551
        %556 = vst [vmem:[#allocation3 + $0xa8] sm:$0xff] %v552
        %557 = vst [vmem:[#allocation3 + $0xb0] sm:$0xff] %v553
        %558 = vst [vmem:[#allocation3 + $0xb8] sm:$0xff] %v554
        %559 = vrot.lane.b32.xlu0 %v330, 113
        %v560 = vpop.permute.xlu0 %559
        %561 = vrot.lane.b32.xlu0 %v331, 113
        %v562 = vpop.permute.xlu0 %561
        %563 = vrot.lane.b32.xlu0 %v332, 113
        %v564 = vpop.permute.xlu0 %563
        %565 = vrot.lane.b32.xlu0 %v333, 113
        %v566 = vpop.permute.xlu0 %565
        %vm567 = vcmp.lt.s32.totalorder %v343, 113
        %v568 = vsel %vm567, %v564, %v566
        %v569 = vsel %vm567, %v562, %v564
        %v570 = vsel %vm567, %v560, %v562
        %v571 = vsel %vm567, %v566, %v560
        %s572 = scalar_lea.vmem [#allocation4], 6
        %v573 = vld [vmem:[%s572] ss:$8 sm:$0xf]
        %v575 = vlaneseq
        %v576 = vshrl.u32 %v575, 7
        %v577 = vsub.s32 0, %v576
        %v578 = vrot.slane %v573, %v577
        %v579 = vlaneseq
        %v580 = vshrl.u32 %v579, 7
        %v581 = vsub.s32 1, %v580
        %v582 = vrot.slane %v573, %v581
        %v583 = vlaneseq
        %v584 = vshrl.u32 %v583, 7
        %v585 = vsub.s32 2, %v584
        %v586 = vrot.slane %v573, %v585
        %v587 = vlaneseq
        %v588 = vshrl.u32 %v587, 7
        %v589 = vsub.s32 3, %v588
        %v590 = vrot.slane %v573, %v589
        %v595 = vmul.f32 %v570, %v578
        %v596 = vmul.f32 %v569, %v582
        %v597 = vmul.f32 %v568, %v586
        %v598 = vmul.f32 %v571, %v590
        %599 = vst [vmem:[#allocation3 + $0xc0] sm:$0xff] %v595
        %600 = vst [vmem:[#allocation3 + $0xc8] sm:$0xff] %v596
        %601 = vst [vmem:[#allocation3 + $0xd0] sm:$0xff] %v597
        %602 = vst [vmem:[#allocation3 + $0xd8] sm:$0xff] %v598
        %603 = vrot.lane.b32.xlu0 %v330, 112
        %v604 = vpop.permute.xlu0 %603
        %605 = vrot.lane.b32.xlu0 %v331, 112
        %v606 = vpop.permute.xlu0 %605
        %607 = vrot.lane.b32.xlu0 %v332, 112
        %v608 = vpop.permute.xlu0 %607
        %609 = vrot.lane.b32.xlu0 %v333, 112
        %v610 = vpop.permute.xlu0 %609
        %vm611 = vcmp.lt.s32.totalorder %v343, 112
        %v612 = vsel %vm611, %v608, %v610
        %v613 = vsel %vm611, %v606, %v608
        %v614 = vsel %vm611, %v604, %v606
        %v615 = vsel %vm611, %v610, %v604
        %s616 = scalar_lea.vmem [#allocation4], 7
        %v617 = vld [vmem:[%s616] ss:$8 sm:$0xf]
        %v619 = vlaneseq
        %v620 = vshrl.u32 %v619, 7
        %v621 = vsub.s32 0, %v620
        %v622 = vrot.slane %v617, %v621
        %v623 = vlaneseq
        %v624 = vshrl.u32 %v623, 7
        %v625 = vsub.s32 1, %v624
        %v626 = vrot.slane %v617, %v625
        %v627 = vlaneseq
        %v628 = vshrl.u32 %v627, 7
        %v629 = vsub.s32 2, %v628
        %v630 = vrot.slane %v617, %v629
        %v631 = vlaneseq
        %v632 = vshrl.u32 %v631, 7
        %v633 = vsub.s32 3, %v632
        %v634 = vrot.slane %v617, %v633
        %v639 = vmul.f32 %v614, %v622
        %v640 = vmul.f32 %v613, %v626
        %v641 = vmul.f32 %v612, %v630
        %v642 = vmul.f32 %v615, %v634
        %643 = vst [vmem:[#allocation3 + $0xe0] sm:$0xff] %v639
        %644 = vst [vmem:[#allocation3 + $0xe8] sm:$0xff] %v640
        %645 = vst [vmem:[#allocation3 + $0xf0] sm:$0xff] %v641
        %646 = vst [vmem:[#allocation3 + $0xf8] sm:$0xff] %v642
        %647 = vrot.lane.b32.xlu0 %v330, 111
        %v648 = vpop.permute.xlu0 %647
        %649 = vrot.lane.b32.xlu0 %v331, 111
        %v650 = vpop.permute.xlu0 %649
        %651 = vrot.lane.b32.xlu0 %v332, 111
        %v652 = vpop.permute.xlu0 %651
        %653 = vrot.lane.b32.xlu0 %v333, 111
        %v654 = vpop.permute.xlu0 %653
        %vm655 = vcmp.lt.s32.totalorder %v343, 111
        %v656 = vsel %vm655, %v652, %v654
        %v657 = vsel %vm655, %v650, %v652
        %v658 = vsel %vm655, %v648, %v650
        %v659 = vsel %vm655, %v654, %v648
        %s660 = scalar_lea.vmem [#allocation4], 32
        %v661 = vld [vmem:[%s660] ss:$8 sm:$0xf]
        %v663 = vlaneseq
        %v664 = vshrl.u32 %v663, 7
        %v665 = vsub.s32 0, %v664
        %v666 = vrot.slane %v661, %v665
        %v667 = vlaneseq
        %v668 = vshrl.u32 %v667, 7
        %v669 = vsub.s32 1, %v668
        %v670 = vrot.slane %v661, %v669
        %v671 = vlaneseq
        %v672 = vshrl.u32 %v671, 7
        %v673 = vsub.s32 2, %v672
        %v674 = vrot.slane %v661, %v673
        %v675 = vlaneseq
        %v676 = vshrl.u32 %v675, 7
        %v677 = vsub.s32 3, %v676
        %v678 = vrot.slane %v661, %v677
        %v683 = vmul.f32 %v658, %v666
        %v684 = vmul.f32 %v657, %v670
        %v685 = vmul.f32 %v656, %v674
        %v686 = vmul.f32 %v659, %v678
        %687 = vst [vmem:[#allocation3 + $0x100] sm:$0xff] %v683
        %688 = vst [vmem:[#allocation3 + $0x108] sm:$0xff] %v684
        %689 = vst [vmem:[#allocation3 + $0x110] sm:$0xff] %v685
        %690 = vst [vmem:[#allocation3 + $0x118] sm:$0xff] %v686
        %v691 = vld [vmem:[#allocation9] sm:$0xff]
        %v692 = vld [vmem:[#allocation9 + $0x8] sm:$0xff]
        %v693 = vld [vmem:[#allocation9 + $0x10] sm:$0xff]
        %v694 = vld [vmem:[#allocation3] sm:$0xff]
        %v695 = vld [vmem:[#allocation3 + $0x8] sm:$0xff]
        %v696 = vld [vmem:[#allocation3 + $0x10] sm:$0xff]
        %v697 = vld [vmem:[#allocation3 + $0x18] sm:$0xff]
        %v698 = vld [vmem:[#allocation3 + $0x20] sm:$0xff]
        %v699 = vld [vmem:[#allocation3 + $0x28] sm:$0xff]
        %v700 = vld [vmem:[#allocation3 + $0x30] sm:$0xff]
        %v701 = vld [vmem:[#allocation3 + $0x38] sm:$0xff]
        %v702 = vld [vmem:[#allocation3 + $0x40] sm:$0xff]
        %v703 = vld [vmem:[#allocation3 + $0x48] sm:$0xff]
        %v704 = vld [vmem:[#allocation3 + $0x50] sm:$0xff]
        %v705 = vld [vmem:[#allocation3 + $0x58] sm:$0xff]
        %v706 = vld [vmem:[#allocation3 + $0x60] sm:$0xff]
        %v707 = vld [vmem:[#allocation3 + $0x68] sm:$0xff]
        %v708 = vld [vmem:[#allocation3 + $0x70] sm:$0xff]
        %v709 = vld [vmem:[#allocation3 + $0x78] sm:$0xff]
        %v710 = vld [vmem:[#allocation3 + $0x80] sm:$0xff]
        %v711 = vld [vmem:[#allocation3 + $0x88] sm:$0xff]
        %v712 = vld [vmem:[#allocation3 + $0x90] sm:$0xff]
        %v713 = vld [vmem:[#allocation3 + $0x98] sm:$0xff]
        %v714 = vld [vmem:[#allocation3 + $0xa0] sm:$0xff]
        %v715 = vld [vmem:[#allocation3 + $0xa8] sm:$0xff]
        %v716 = vld [vmem:[#allocation3 + $0xb0] sm:$0xff]
        %v717 = vld [vmem:[#allocation3 + $0xb8] sm:$0xff]
        %v718 = vld [vmem:[#allocation3 + $0xc0] sm:$0xff]
        %v719 = vld [vmem:[#allocation3 + $0xc8] sm:$0xff]
        %v720 = vld [vmem:[#allocation3 + $0xd0] sm:$0xff]
        %v721 = vld [vmem:[#allocation3 + $0xd8] sm:$0xff]
        %v722 = vld [vmem:[#allocation3 + $0xe0] sm:$0xff]
        %v723 = vld [vmem:[#allocation3 + $0xe8] sm:$0xff]
        %v724 = vld [vmem:[#allocation3 + $0xf0] sm:$0xff]
        %v725 = vld [vmem:[#allocation3 + $0xf8] sm:$0xff]
        %v726 = vld [vmem:[#allocation3 + $0x100] sm:$0xff]
        %v727 = vld [vmem:[#allocation3 + $0x108] sm:$0xff]
        %v728 = vld [vmem:[#allocation3 + $0x110] sm:$0xff]
        %v729 = vld [vmem:[#allocation3 + $0x118] sm:$0xff]
        %vm730 = vcmask 588800
        %v732 = vsel %vm730, %v691, 0
        %v735 = vsel %vm730, %v692, 0
        %v738 = vsel %vm730, %v693, 0
        %740 = vmatprep.subr.mxu0 %v695
        %741 = vmatpush1.msra.mxu0 %v694
        %742 = vmatprep.subr.mxu0 %v699
        %743 = vmatpush1.msra.mxu0 %v698
        %744 = vmatprep.subr.mxu0 %v703
        %745 = vmatpush1.msra.mxu0 %v702
        %746 = vmatprep.subr.mxu0 %v707
        %747 = vmatpush1.msra.mxu0 %v706
        %748 = vmatprep.subr.mxu0 %v711
        %749 = vmatpush1.msra.mxu0 %v710
        %750 = vmatprep.subr.mxu0 %v715
        %751 = vmatpush1.msra.mxu0 %v714
        %752 = vmatprep.subr.mxu0 %v719
        %753 = vmatpush1.msra.mxu0 %v718
        %754 = vmatprep.subr.mxu0 %v723
        %755 = vmatpush1.msra.mxu0 %v722
        %756 = vmatprep.subr.mxu0 %v727
        %757 = vmatpush1.msra.mxu0 %v726
        %758 = vmatprep.subr.mxu0 0.0
        %759 = vmatpush1.msra.mxu0 0.0
        %760 = vmatprep.subr.mxu0 0.0
        %761 = vmatpush1.msra.mxu0 0.0
        %762 = vmatprep.subr.mxu0 0.0
        %763 = vmatpush1.msra.mxu0 0.0
        %764 = vmatprep.subr.mxu0 0.0
        %765 = vmatpush1.msra.mxu0 0.0
        %766 = vmatprep.subr.mxu0 0.0
        %767 = vmatpush1.msra.mxu0 0.0
        %768 = vmatprep.subr.mxu0 0.0
        %769 = vmatpush1.msra.mxu0 0.0
        %770 = vmatprep.subr.mxu0 0.0
        %771 = vmatpush1.msra.mxu0 0.0
        %772 = vmatprep.subr.mxu0 0.0
        %773 = vmatpush1.msra.mxu0 0.0
        %774 = vmatprep.subr.mxu0 0.0
        %775 = vmatpush1.msra.mxu0 0.0
        %776 = vmatprep.subr.mxu0 0.0
        %777 = vmatpush1.msra.mxu0 0.0
        %778 = vmatprep.subr.mxu0 0.0
        %779 = vmatpush1.msra.mxu0 0.0
        %780 = vmatprep.subr.mxu0 0.0
        %781 = vmatpush1.msra.mxu0 0.0
        %782 = vmatprep.subr.mxu0 0.0
        %783 = vmatpush1.msra.mxu0 0.0
        %784 = vmatprep.subr.mxu0 0.0
        %785 = vmatpush1.msra.mxu0 0.0
        %786 = vmatprep.subr.mxu0 0.0
        %787 = vmatpush1.msra.mxu0 0.0
        %788 = vmatprep.subr.mxu0 0.0
        %789 = vmatpush1.msra.mxu0 0.0
        %790 = vmatprep.subr.mxu0 0.0
        %791 = vmatpush1.msra.mxu0 0.0
        %792 = vmatprep.subr.mxu0 0.0
        %793 = vmatpush1.msra.mxu0 0.0
        %794 = vmatprep.subr.mxu0 0.0
        %795 = vmatpush1.msra.mxu0 0.0
        %796 = vmatprep.subr.mxu0 0.0
        %797 = vmatpush1.msra.mxu0 0.0
        %798 = vmatprep.subr.mxu0 0.0
        %799 = vmatpush1.msra.mxu0 0.0
        %800 = vmatprep.subr.mxu0 0.0
        %801 = vmatpush1.msra.mxu0 0.0
        %802 = vmatprep.subr.mxu0 0.0
        %803 = vmatpush1.msra.mxu0 0.0
        %804 = vmatprep.mubr.f32.mxu0 0.0
        %805 = vmatmul.mubr.f32.gmra.mrb[0].mxu0 %v732
        %v806 = vpop.f32.mrb[0].mxu0
        %v807 = vadd.f32 0.0, %v806
        %v808 = vpop.f32.mrb[0].mxu0
        %v809 = vadd.f32 0.0, %v808
        %810 = vmatprep.mubr.f32.mxu0 0.0
        %811 = vmatmul.mubr.f32.gmra.mrb[0].mxu0 %v735
        %v812 = vpop.f32.mrb[0].mxu0
        %v813 = vadd.f32 0.0, %v812
        %v814 = vpop.f32.mrb[0].mxu0
        %v815 = vadd.f32 0.0, %v814
        %816 = vmatprep.mubr.f32.mxu0 0.0
        %817 = vmatmul.mubr.f32.gmra.mrb[0].mxu0 %v738
        %v818 = vpop.f32.mrb[0].mxu0
        %v819 = vadd.f32 0.0, %v818
        %v820 = vpop.f32.mrb[0].mxu0
        %v821 = vadd.f32 0.0, %v820
        %822 = vdwg.mxu0
        %823 = vmatprep.subr.mxu0 %v697
        %824 = vmatpush1.msra.mxu0 %v696
        %825 = vmatprep.subr.mxu0 %v701
        %826 = vmatpush1.msra.mxu0 %v700
        %827 = vmatprep.subr.mxu0 %v705
        %828 = vmatpush1.msra.mxu0 %v704
        %829 = vmatprep.subr.mxu0 %v709
        %830 = vmatpush1.msra.mxu0 %v708
        %831 = vmatprep.subr.mxu0 %v713
        %832 = vmatpush1.msra.mxu0 %v712
        %833 = vmatprep.subr.mxu0 %v717
        %834 = vmatpush1.msra.mxu0 %v716
        %835 = vmatprep.subr.mxu0 %v721
        %836 = vmatpush1.msra.mxu0 %v720
        %837 = vmatprep.subr.mxu0 %v725
        %838 = vmatpush1.msra.mxu0 %v724
        %839 = vmatprep.subr.mxu0 %v729
        %840 = vmatpush1.msra.mxu0 %v728
        %841 = vmatprep.subr.mxu0 0.0
        %842 = vmatpush1.msra.mxu0 0.0
        %843 = vmatprep.subr.mxu0 0.0
        %844 = vmatpush1.msra.mxu0 0.0
        %845 = vmatprep.subr.mxu0 0.0
        %846 = vmatpush1.msra.mxu0 0.0
        %847 = vmatprep.subr.mxu0 0.0
        %848 = vmatpush1.msra.mxu0 0.0
        %849 = vmatprep.subr.mxu0 0.0
        %850 = vmatpush1.msra.mxu0 0.0
        %851 = vmatprep.subr.mxu0 0.0
        %852 = vmatpush1.msra.mxu0 0.0
        %853 = vmatprep.subr.mxu0 0.0
        %854 = vmatpush1.msra.mxu0 0.0
        %855 = vmatprep.subr.mxu0 0.0
        %856 = vmatpush1.msra.mxu0 0.0
        %857 = vmatprep.subr.mxu0 0.0
        %858 = vmatpush1.msra.mxu0 0.0
        %859 = vmatprep.subr.mxu0 0.0
        %860 = vmatpush1.msra.mxu0 0.0
        %861 = vmatprep.subr.mxu0 0.0
        %862 = vmatpush1.msra.mxu0 0.0
        %863 = vmatprep.subr.mxu0 0.0
        %864 = vmatpush1.msra.mxu0 0.0
        %865 = vmatprep.subr.mxu0 0.0
        %866 = vmatpush1.msra.mxu0 0.0
        %867 = vmatprep.subr.mxu0 0.0
        %868 = vmatpush1.msra.mxu0 0.0
        %869 = vmatprep.subr.mxu0 0.0
        %870 = vmatpush1.msra.mxu0 0.0
        %871 = vmatprep.subr.mxu0 0.0
        %872 = vmatpush1.msra.mxu0 0.0
        %873 = vmatprep.subr.mxu0 0.0
        %874 = vmatpush1.msra.mxu0 0.0
        %875 = vmatprep.subr.mxu0 0.0
        %876 = vmatpush1.msra.mxu0 0.0
        %877 = vmatprep.subr.mxu0 0.0
        %878 = vmatpush1.msra.mxu0 0.0
        %879 = vmatprep.subr.mxu0 0.0
        %880 = vmatpush1.msra.mxu0 0.0
        %881 = vmatprep.subr.mxu0 0.0
        %882 = vmatpush1.msra.mxu0 0.0
        %883 = vmatprep.subr.mxu0 0.0
        %884 = vmatpush1.msra.mxu0 0.0
        %885 = vmatprep.subr.mxu0 0.0
        %886 = vmatpush1.msra.mxu0 0.0
        %887 = vmatprep.mubr.f32.mxu0 0.0
        %888 = vmatmul.mubr.f32.gmra.mrb[0].mxu0 %v732
        %v889 = vpop.f32.mrb[0].mxu0
        %v890 = vadd.f32 0.0, %v889
        %v891 = vpop.f32.mrb[0].mxu0
        %v892 = vadd.f32 0.0, %v891
        %893 = vmatprep.mubr.f32.mxu0 0.0
        %894 = vmatmul.mubr.f32.gmra.mrb[0].mxu0 %v735
        %v895 = vpop.f32.mrb[0].mxu0
        %v896 = vadd.f32 0.0, %v895
        %v897 = vpop.f32.mrb[0].mxu0
        %v898 = vadd.f32 0.0, %v897
        %899 = vmatprep.mubr.f32.mxu0 0.0
        %900 = vmatmul.mubr.f32.gmra.mrb[0].mxu0 %v738
        %v901 = vpop.f32.mrb[0].mxu0
        %v902 = vadd.f32 0.0, %v901
        %v903 = vpop.f32.mrb[0].mxu0
        %v904 = vadd.f32 0.0, %v903
        %905 = vdwg.mxu0
        %v906 = vadd.f32 %v807, %v809
        %907 = vadd.xlane.f32.xlu0 %v906
        %v908 = vpop.xlane.xlu0 %907
        %v909 = vmul.f32 %v908, %v290
        %v910 = vsub.f32 %v807, %v909
        %v911 = vsub.f32 %v809, %v909
        %v912 = vmul.f32 %v910, %v910
        %v913 = vmul.f32 %v911, %v911
        %v914 = vadd.f32 %v912, %v913
        %915 = vadd.xlane.f32.xlu0 %v914
        %v916 = vpop.xlane.xlu0 %915
        %v917 = vmul.f32 %v916, %v290
        %v918 = vadd.f32 %v917, 1e-05
        %v919 = vrsqrt.pop %v918
        %v920 = vmul.f32 %v910, %v919
        %v921 = vmul.f32 %v911, %v919
        %v922 = vmax.f32 %v920, 0.0
        %v923 = vmax.f32 %v921, 0.0
        %924 = vst [vmem:[#allocation2] sm:$0xff] %v922
        %925 = vst [vmem:[#allocation2 + $0x8] sm:$0xff] %v923
        %v926 = vadd.f32 %v890, %v892
        %927 = vadd.xlane.f32.xlu0 %v926
        %v928 = vpop.xlane.xlu0 %927
        %v929 = vmul.f32 %v928, %v290
        %v930 = vsub.f32 %v890, %v929
        %v931 = vsub.f32 %v892, %v929
        %v932 = vmul.f32 %v930, %v930
        %v933 = vmul.f32 %v931, %v931
        %v934 = vadd.f32 %v932, %v933
        %935 = vadd.xlane.f32.xlu0 %v934
        %v936 = vpop.xlane.xlu0 %935
        %v937 = vmul.f32 %v936, %v290
        %v938 = vadd.f32 %v937, 1e-05
        %v939 = vrsqrt.pop %v938
        %v940 = vmul.f32 %v930, %v939
        %v941 = vmul.f32 %v931, %v939
        %v942 = vmax.f32 %v940, 0.0
        %v943 = vmax.f32 %v941, 0.0
        %944 = vst [vmem:[#allocation2 + $0x10] sm:$0xff] %v942
        %945 = vst [vmem:[#allocation2 + $0x18] sm:$0xff] %v943
        %v946 = vld [vmem:[#allocation2] sm:$0xff]
        %v947 = vld [vmem:[#allocation2 + $0x8] sm:$0xff]
        %v948 = vld [vmem:[#allocation2 + $0x10] sm:$0xff]
        %v949 = vld [vmem:[#allocation2 + $0x18] sm:$0xff]
        %950 = vrot.lane.b32.xlu0 %v946, 17
        %v951 = vpop.permute.xlu0 %950
        %952 = vrot.lane.b32.xlu0 %v947, 17
        %v953 = vpop.permute.xlu0 %952
        %954 = vrot.lane.b32.xlu0 %v948, 17
        %v955 = vpop.permute.xlu0 %954
        %956 = vrot.lane.b32.xlu0 %v949, 17
        %v957 = vpop.permute.xlu0 %956
        %v958 = vsel %vm344, %v955, %v957
        %v959 = vsel %vm344, %v953, %v955
        %v960 = vsel %vm344, %v951, %v953
        %v961 = vsel %vm344, %v957, %v951
        %v962 = vld [vmem:[#allocation4] ss:$8 sm:$0xf]
        %v964 = vlaneseq
        %v965 = vshrl.u32 %v964, 7
        %v966 = vsub.s32 0, %v965
        %v967 = vrot.slane %v962, %v966
        %v968 = vlaneseq
        %v969 = vshrl.u32 %v968, 7
        %v970 = vsub.s32 1, %v969
        %v971 = vrot.slane %v962, %v970
        %v972 = vlaneseq
        %v973 = vshrl.u32 %v972, 7
        %v974 = vsub.s32 2, %v973
        %v975 = vrot.slane %v962, %v974
        %v976 = vlaneseq
        %v977 = vshrl.u32 %v976, 7
        %v978 = vsub.s32 3, %v977
        %v979 = vrot.slane %v962, %v978
        %v984 = vmul.f32 %v961, %v967
        %v985 = vmul.f32 %v960, %v971
        %v986 = vmul.f32 %v959, %v975
        %v987 = vmul.f32 %v958, %v979
        %988 = vst [vmem:[#allocation3] sm:$0xff] %v984
        %989 = vst [vmem:[#allocation3 + $0x8] sm:$0xff] %v985
        %990 = vst [vmem:[#allocation3 + $0x10] sm:$0xff] %v986
        %991 = vst [vmem:[#allocation3 + $0x18] sm:$0xff] %v987
        %992 = vrot.lane.b32.xlu0 %v946, 16
        %v993 = vpop.permute.xlu0 %992
        %994 = vrot.lane.b32.xlu0 %v947, 16
        %v995 = vpop.permute.xlu0 %994
        %996 = vrot.lane.b32.xlu0 %v948, 16
        %v997 = vpop.permute.xlu0 %996
        %998 = vrot.lane.b32.xlu0 %v949, 16
        %v999 = vpop.permute.xlu0 %998
        %v1000 = vsel %vm387, %v997, %v999
        %v1001 = vsel %vm387, %v995, %v997
        %v1002 = vsel %vm387, %v993, %v995
        %v1003 = vsel %vm387, %v999, %v993
        %v1004 = vld [vmem:[%s392] ss:$8 sm:$0xf]
        %v1006 = vlaneseq
        %v1007 = vshrl.u32 %v1006, 7
        %v1008 = vsub.s32 0, %v1007
        %v1009 = vrot.slane %v1004, %v1008
        %v1010 = vlaneseq
        %v1011 = vshrl.u32 %v1010, 7
        %v1012 = vsub.s32 1, %v1011
        %v1013 = vrot.slane %v1004, %v1012
        %v1014 = vlaneseq
        %v1015 = vshrl.u32 %v1014, 7
        %v1016 = vsub.s32 2, %v1015
        %v1017 = vrot.slane %v1004, %v1016
        %v1018 = vlaneseq
        %v1019 = vshrl.u32 %v1018, 7
        %v1020 = vsub.s32 3, %v1019
        %v1021 = vrot.slane %v1004, %v1020
        %v1026 = vmul.f32 %v1003, %v1009
        %v1027 = vmul.f32 %v1002, %v1013
        %v1028 = vmul.f32 %v1001, %v1017
        %v1029 = vmul.f32 %v1000, %v1021
        %1030 = vst [vmem:[#allocation3 + $0x20] sm:$0xff] %v1026
        %1031 = vst [vmem:[#allocation3 + $0x28] sm:$0xff] %v1027
        %1032 = vst [vmem:[#allocation3 + $0x30] sm:$0xff] %v1028
        %1033 = vst [vmem:[#allocation3 + $0x38] sm:$0xff] %v1029
        %1034 = vrot.lane.b32.xlu0 %v946, 15
        %v1035 = vpop.permute.xlu0 %1034
        %1036 = vrot.lane.b32.xlu0 %v947, 15
        %v1037 = vpop.permute.xlu0 %1036
        %1038 = vrot.lane.b32.xlu0 %v948, 15
        %v1039 = vpop.permute.xlu0 %1038
        %1040 = vrot.lane.b32.xlu0 %v949, 15
        %v1041 = vpop.permute.xlu0 %1040
        %v1042 = vsel %vm431, %v1039, %v1041
        %v1043 = vsel %vm431, %v1037, %v1039
        %v1044 = vsel %vm431, %v1035, %v1037
        %v1045 = vsel %vm431, %v1041, %v1035
        %v1046 = vld [vmem:[%s436] ss:$8 sm:$0xf]
        %v1048 = vlaneseq
        %v1049 = vshrl.u32 %v1048, 7
        %v1050 = vsub.s32 0, %v1049
        %v1051 = vrot.slane %v1046, %v1050
        %v1052 = vlaneseq
        %v1053 = vshrl.u32 %v1052, 7
        %v1054 = vsub.s32 1, %v1053
        %v1055 = vrot.slane %v1046, %v1054
        %v1056 = vlaneseq
        %v1057 = vshrl.u32 %v1056, 7
        %v1058 = vsub.s32 2, %v1057
        %v1059 = vrot.slane %v1046, %v1058
        %v1060 = vlaneseq
        %v1061 = vshrl.u32 %v1060, 7
        %v1062 = vsub.s32 3, %v1061
        %v1063 = vrot.slane %v1046, %v1062
        %v1068 = vmul.f32 %v1045, %v1051
        %v1069 = vmul.f32 %v1044, %v1055
        %v1070 = vmul.f32 %v1043, %v1059
        %v1071 = vmul.f32 %v1042, %v1063
        %1072 = vst [vmem:[#allocation3 + $0x40] sm:$0xff] %v1068
        %1073 = vst [vmem:[#allocation3 + $0x48] sm:$0xff] %v1069
        %1074 = vst [vmem:[#allocation3 + $0x50] sm:$0xff] %v1070
        %1075 = vst [vmem:[#allocation3 + $0x58] sm:$0xff] %v1071
        %1076 = vrot.lane.b32.xlu0 %v946, 1
        %v1077 = vpop.permute.xlu0 %1076
        %1078 = vrot.lane.b32.xlu0 %v947, 1
        %v1079 = vpop.permute.xlu0 %1078
        %1080 = vrot.lane.b32.xlu0 %v948, 1
        %v1081 = vpop.permute.xlu0 %1080
        %1082 = vrot.lane.b32.xlu0 %v949, 1
        %v1083 = vpop.permute.xlu0 %1082
        %v1084 = vsel %vm475, %v1081, %v1083
        %v1085 = vsel %vm475, %v1079, %v1081
        %v1086 = vsel %vm475, %v1077, %v1079
        %v1087 = vsel %vm475, %v1083, %v1077
        %v1088 = vld [vmem:[%s480] ss:$8 sm:$0xf]
        %v1090 = vlaneseq
        %v1091 = vshrl.u32 %v1090, 7
        %v1092 = vsub.s32 0, %v1091
        %v1093 = vrot.slane %v1088, %v1092
        %v1094 = vlaneseq
        %v1095 = vshrl.u32 %v1094, 7
        %v1096 = vsub.s32 1, %v1095
        %v1097 = vrot.slane %v1088, %v1096
        %v1098 = vlaneseq
        %v1099 = vshrl.u32 %v1098, 7
        %v1100 = vsub.s32 2, %v1099
        %v1101 = vrot.slane %v1088, %v1100
        %v1102 = vlaneseq
        %v1103 = vshrl.u32 %v1102, 7
        %v1104 = vsub.s32 3, %v1103
        %v1105 = vrot.slane %v1088, %v1104
        %v1110 = vmul.f32 %v1087, %v1093
        %v1111 = vmul.f32 %v1086, %v1097
        %v1112 = vmul.f32 %v1085, %v1101
        %v1113 = vmul.f32 %v1084, %v1105
        %1114 = vst [vmem:[#allocation3 + $0x60] sm:$0xff] %v1110
        %1115 = vst [vmem:[#allocation3 + $0x68] sm:$0xff] %v1111
        %1116 = vst [vmem:[#allocation3 + $0x70] sm:$0xff] %v1112
        %1117 = vst [vmem:[#allocation3 + $0x78] sm:$0xff] %v1113
        %1118 = vst [vmem:[#allocation3 + $0x80] sm:$0xff] %v946
        %1119 = vst [vmem:[#allocation3 + $0x88] sm:$0xff] %v947
        %1120 = vst [vmem:[#allocation3 + $0x90] sm:$0xff] %v948
        %1121 = vst [vmem:[#allocation3 + $0x98] sm:$0xff] %v949
        %1122 = vrot.lane.b32.xlu0 %v946, 127
        %v1123 = vpop.permute.xlu0 %1122
        %1124 = vrot.lane.b32.xlu0 %v947, 127
        %v1125 = vpop.permute.xlu0 %1124
        %1126 = vrot.lane.b32.xlu0 %v948, 127
        %v1127 = vpop.permute.xlu0 %1126
        %1128 = vrot.lane.b32.xlu0 %v949, 127
        %v1129 = vpop.permute.xlu0 %1128
        %v1130 = vsel %vm523, %v1127, %v1129
        %v1131 = vsel %vm523, %v1125, %v1127
        %v1132 = vsel %vm523, %v1123, %v1125
        %v1133 = vsel %vm523, %v1129, %v1123
        %v1134 = vld [vmem:[%s528] ss:$8 sm:$0xf]
        %v1136 = vlaneseq
        %v1137 = vshrl.u32 %v1136, 7
        %v1138 = vsub.s32 0, %v1137
        %v1139 = vrot.slane %v1134, %v1138
        %v1140 = vlaneseq
        %v1141 = vshrl.u32 %v1140, 7
        %v1142 = vsub.s32 1, %v1141
        %v1143 = vrot.slane %v1134, %v1142
        %v1144 = vlaneseq
        %v1145 = vshrl.u32 %v1144, 7
        %v1146 = vsub.s32 2, %v1145
        %v1147 = vrot.slane %v1134, %v1146
        %v1148 = vlaneseq
        %v1149 = vshrl.u32 %v1148, 7
        %v1150 = vsub.s32 3, %v1149
        %v1151 = vrot.slane %v1134, %v1150
        %v1156 = vmul.f32 %v1132, %v1139
        %v1157 = vmul.f32 %v1131, %v1143
        %v1158 = vmul.f32 %v1130, %v1147
        %v1159 = vmul.f32 %v1133, %v1151
        %1160 = vst [vmem:[#allocation3 + $0xa0] sm:$0xff] %v1156
        %1161 = vst [vmem:[#allocation3 + $0xa8] sm:$0xff] %v1157
        %1162 = vst [vmem:[#allocation3 + $0xb0] sm:$0xff] %v1158
        %1163 = vst [vmem:[#allocation3 + $0xb8] sm:$0xff] %v1159
        %1164 = vrot.lane.b32.xlu0 %v946, 113
        %v1165 = vpop.permute.xlu0 %1164
        %1166 = vrot.lane.b32.xlu0 %v947, 113
        %v1167 = vpop.permute.xlu0 %1166
        %1168 = vrot.lane.b32.xlu0 %v948, 113
        %v1169 = vpop.permute.xlu0 %1168
        %1170 = vrot.lane.b32.xlu0 %v949, 113
        %v1171 = vpop.permute.xlu0 %1170
        %v1172 = vsel %vm567, %v1169, %v1171
        %v1173 = vsel %vm567, %v1167, %v1169
        %v1174 = vsel %vm567, %v1165, %v1167
        %v1175 = vsel %vm567, %v1171, %v1165
        %v1176 = vld [vmem:[%s572] ss:$8 sm:$0xf]
        %v1178 = vlaneseq
        %v1179 = vshrl.u32 %v1178, 7
        %v1180 = vsub.s32 0, %v1179
        %v1181 = vrot.slane %v1176, %v1180
        %v1182 = vlaneseq
        %v1183 = vshrl.u32 %v1182, 7
        %v1184 = vsub.s32 1, %v1183
        %v1185 = vrot.slane %v1176, %v1184
        %v1186 = vlaneseq
        %v1187 = vshrl.u32 %v1186, 7
        %v1188 = vsub.s32 2, %v1187
        %v1189 = vrot.slane %v1176, %v1188
        %v1190 = vlaneseq
        %v1191 = vshrl.u32 %v1190, 7
        %v1192 = vsub.s32 3, %v1191
        %v1193 = vrot.slane %v1176, %v1192
        %v1198 = vmul.f32 %v1174, %v1181
        %v1199 = vmul.f32 %v1173, %v1185
        %v1200 = vmul.f32 %v1172, %v1189
        %v1201 = vmul.f32 %v1175, %v1193
        %1202 = vst [vmem:[#allocation3 + $0xc0] sm:$0xff] %v1198
        %1203 = vst [vmem:[#allocation3 + $0xc8] sm:$0xff] %v1199
        %1204 = vst [vmem:[#allocation3 + $0xd0] sm:$0xff] %v1200
        %1205 = vst [vmem:[#allocation3 + $0xd8] sm:$0xff] %v1201
        %1206 = vrot.lane.b32.xlu0 %v946, 112
        %v1207 = vpop.permute.xlu0 %1206
        %1208 = vrot.lane.b32.xlu0 %v947, 112
        %v1209 = vpop.permute.xlu0 %1208
        %1210 = vrot.lane.b32.xlu0 %v948, 112
        %v1211 = vpop.permute.xlu0 %1210
        %1212 = vrot.lane.b32.xlu0 %v949, 112
        %v1213 = vpop.permute.xlu0 %1212
        %v1214 = vsel %vm611, %v1211, %v1213
        %v1215 = vsel %vm611, %v1209, %v1211
        %v1216 = vsel %vm611, %v1207, %v1209
        %v1217 = vsel %vm611, %v1213, %v1207
        %v1218 = vld [vmem:[%s616] ss:$8 sm:$0xf]
        %v1220 = vlaneseq
        %v1221 = vshrl.u32 %v1220, 7
        %v1222 = vsub.s32 0, %v1221
        %v1223 = vrot.slane %v1218, %v1222
        %v1224 = vlaneseq
        %v1225 = vshrl.u32 %v1224, 7
        %v1226 = vsub.s32 1, %v1225
        %v1227 = vrot.slane %v1218, %v1226
        %v1228 = vlaneseq
        %v1229 = vshrl.u32 %v1228, 7
        %v1230 = vsub.s32 2, %v1229
        %v1231 = vrot.slane %v1218, %v1230
        %v1232 = vlaneseq
        %v1233 = vshrl.u32 %v1232, 7
        %v1234 = vsub.s32 3, %v1233
        %v1235 = vrot.slane %v1218, %v1234
        %v1240 = vmul.f32 %v1216, %v1223
        %v1241 = vmul.f32 %v1215, %v1227
        %v1242 = vmul.f32 %v1214, %v1231
        %v1243 = vmul.f32 %v1217, %v1235
        %1244 = vst [vmem:[#allocation3 + $0xe0] sm:$0xff] %v1240
        %1245 = vst [vmem:[#allocation3 + $0xe8] sm:$0xff] %v1241
        %1246 = vst [vmem:[#allocation3 + $0xf0] sm:$0xff] %v1242
        %1247 = vst [vmem:[#allocation3 + $0xf8] sm:$0xff] %v1243
        %1248 = vrot.lane.b32.xlu0 %v946, 111
        %v1249 = vpop.permute.xlu0 %1248
        %1250 = vrot.lane.b32.xlu0 %v947, 111
        %v1251 = vpop.permute.xlu0 %1250
        %1252 = vrot.lane.b32.xlu0 %v948, 111
        %v1253 = vpop.permute.xlu0 %1252
        %1254 = vrot.lane.b32.xlu0 %v949, 111
        %v1255 = vpop.permute.xlu0 %1254
        %v1256 = vsel %vm655, %v1253, %v1255
        %v1257 = vsel %vm655, %v1251, %v1253
        %v1258 = vsel %vm655, %v1249, %v1251
        %v1259 = vsel %vm655, %v1255, %v1249
        %v1260 = vld [vmem:[%s660] ss:$8 sm:$0xf]
        %v1262 = vlaneseq
        %v1263 = vshrl.u32 %v1262, 7
        %v1264 = vsub.s32 0, %v1263
        %v1265 = vrot.slane %v1260, %v1264
        %v1266 = vlaneseq
        %v1267 = vshrl.u32 %v1266, 7
        %v1268 = vsub.s32 1, %v1267
        %v1269 = vrot.slane %v1260, %v1268
        %v1270 = vlaneseq
        %v1271 = vshrl.u32 %v1270, 7
        %v1272 = vsub.s32 2, %v1271
        %v1273 = vrot.slane %v1260, %v1272
        %v1274 = vlaneseq
        %v1275 = vshrl.u32 %v1274, 7
        %v1276 = vsub.s32 3, %v1275
        %v1277 = vrot.slane %v1260, %v1276
        %v1282 = vmul.f32 %v1258, %v1265
        %v1283 = vmul.f32 %v1257, %v1269
        %v1284 = vmul.f32 %v1256, %v1273
        %v1285 = vmul.f32 %v1259, %v1277
        %1286 = vst [vmem:[#allocation3 + $0x100] sm:$0xff] %v1282
        %1287 = vst [vmem:[#allocation3 + $0x108] sm:$0xff] %v1283
        %1288 = vst [vmem:[#allocation3 + $0x110] sm:$0xff] %v1284
        %1289 = vst [vmem:[#allocation3 + $0x118] sm:$0xff] %v1285
        %v1290 = vld [vmem:[%s3] sm:$0xff]
        %v1291 = vld [vmem:[#allocation3] sm:$0xff]
        %v1292 = vld [vmem:[#allocation3 + $0x8] sm:$0xff]
        %v1293 = vld [vmem:[#allocation3 + $0x10] sm:$0xff]
        %v1294 = vld [vmem:[#allocation3 + $0x18] sm:$0xff]
        %v1295 = vld [vmem:[#allocation3 + $0x20] sm:$0xff]
        %v1296 = vld [vmem:[#allocation3 + $0x28] sm:$0xff]
        %v1297 = vld [vmem:[#allocation3 + $0x30] sm:$0xff]
        %v1298 = vld [vmem:[#allocation3 + $0x38] sm:$0xff]
        %v1299 = vld [vmem:[#allocation3 + $0x40] sm:$0xff]
        %v1300 = vld [vmem:[#allocation3 + $0x48] sm:$0xff]
        %v1301 = vld [vmem:[#allocation3 + $0x50] sm:$0xff]
        %v1302 = vld [vmem:[#allocation3 + $0x58] sm:$0xff]
        %v1303 = vld [vmem:[#allocation3 + $0x60] sm:$0xff]
        %v1304 = vld [vmem:[#allocation3 + $0x68] sm:$0xff]
        %v1305 = vld [vmem:[#allocation3 + $0x70] sm:$0xff]
        %v1306 = vld [vmem:[#allocation3 + $0x78] sm:$0xff]
        %v1307 = vld [vmem:[#allocation3 + $0x80] sm:$0xff]
        %v1308 = vld [vmem:[#allocation3 + $0x88] sm:$0xff]
        %v1309 = vld [vmem:[#allocation3 + $0x90] sm:$0xff]
        %v1310 = vld [vmem:[#allocation3 + $0x98] sm:$0xff]
        %v1311 = vld [vmem:[#allocation3 + $0xa0] sm:$0xff]
        %v1312 = vld [vmem:[#allocation3 + $0xa8] sm:$0xff]
        %v1313 = vld [vmem:[#allocation3 + $0xb0] sm:$0xff]
        %v1314 = vld [vmem:[#allocation3 + $0xb8] sm:$0xff]
        %v1315 = vld [vmem:[#allocation3 + $0xc0] sm:$0xff]
        %v1316 = vld [vmem:[#allocation3 + $0xc8] sm:$0xff]
        %v1317 = vld [vmem:[#allocation3 + $0xd0] sm:$0xff]
        %v1318 = vld [vmem:[#allocation3 + $0xd8] sm:$0xff]
        %v1319 = vld [vmem:[#allocation3 + $0xe0] sm:$0xff]
        %v1320 = vld [vmem:[#allocation3 + $0xe8] sm:$0xff]
        %v1321 = vld [vmem:[#allocation3 + $0xf0] sm:$0xff]
        %v1322 = vld [vmem:[#allocation3 + $0xf8] sm:$0xff]
        %v1323 = vld [vmem:[#allocation3 + $0x100] sm:$0xff]
        %v1324 = vld [vmem:[#allocation3 + $0x108] sm:$0xff]
        %v1325 = vld [vmem:[#allocation3 + $0x110] sm:$0xff]
        %v1326 = vld [vmem:[#allocation3 + $0x118] sm:$0xff]
        %v1328 = vsel %vm730, %v1290, 0
        %1330 = vmatprep.subr.mxu0 %v1292
        %1331 = vmatpush1.msra.mxu0 %v1291
        %1332 = vmatprep.subr.mxu0 %v1296
        %1333 = vmatpush1.msra.mxu0 %v1295
        %1334 = vmatprep.subr.mxu0 %v1300
        %1335 = vmatpush1.msra.mxu0 %v1299
        %1336 = vmatprep.subr.mxu0 %v1304
        %1337 = vmatpush1.msra.mxu0 %v1303
        %1338 = vmatprep.subr.mxu0 %v1308
        %1339 = vmatpush1.msra.mxu0 %v1307
        %1340 = vmatprep.subr.mxu0 %v1312
        %1341 = vmatpush1.msra.mxu0 %v1311
        %1342 = vmatprep.subr.mxu0 %v1316
        %1343 = vmatpush1.msra.mxu0 %v1315
        %1344 = vmatprep.subr.mxu0 %v1320
        %1345 = vmatpush1.msra.mxu0 %v1319
        %1346 = vmatprep.subr.mxu0 %v1324
        %1347 = vmatpush1.msra.mxu0 %v1323
        %1348 = vmatprep.subr.mxu0 0.0
        %1349 = vmatpush1.msra.mxu0 0.0
        %1350 = vmatprep.subr.mxu0 0.0
        %1351 = vmatpush1.msra.mxu0 0.0
        %1352 = vmatprep.subr.mxu0 0.0
        %1353 = vmatpush1.msra.mxu0 0.0
        %1354 = vmatprep.subr.mxu0 0.0
        %1355 = vmatpush1.msra.mxu0 0.0
        %1356 = vmatprep.subr.mxu0 0.0
        %1357 = vmatpush1.msra.mxu0 0.0
        %1358 = vmatprep.subr.mxu0 0.0
        %1359 = vmatpush1.msra.mxu0 0.0
        %1360 = vmatprep.subr.mxu0 0.0
        %1361 = vmatpush1.msra.mxu0 0.0
        %1362 = vmatprep.subr.mxu0 0.0
        %1363 = vmatpush1.msra.mxu0 0.0
        %1364 = vmatprep.subr.mxu0 0.0
        %1365 = vmatpush1.msra.mxu0 0.0
        %1366 = vmatprep.subr.mxu0 0.0
        %1367 = vmatpush1.msra.mxu0 0.0
        %1368 = vmatprep.subr.mxu0 0.0
        %1369 = vmatpush1.msra.mxu0 0.0
        %1370 = vmatprep.subr.mxu0 0.0
        %1371 = vmatpush1.msra.mxu0 0.0
        %1372 = vmatprep.subr.mxu0 0.0
        %1373 = vmatpush1.msra.mxu0 0.0
        %1374 = vmatprep.subr.mxu0 0.0
        %1375 = vmatpush1.msra.mxu0 0.0
        %1376 = vmatprep.subr.mxu0 0.0
        %1377 = vmatpush1.msra.mxu0 0.0
        %1378 = vmatprep.subr.mxu0 0.0
        %1379 = vmatpush1.msra.mxu0 0.0
        %1380 = vmatprep.subr.mxu0 0.0
        %1381 = vmatpush1.msra.mxu0 0.0
        %1382 = vmatprep.subr.mxu0 0.0
        %1383 = vmatpush1.msra.mxu0 0.0
        %1384 = vmatprep.subr.mxu0 0.0
        %1385 = vmatpush1.msra.mxu0 0.0
        %1386 = vmatprep.subr.mxu0 0.0
        %1387 = vmatpush1.msra.mxu0 0.0
        %1388 = vmatprep.subr.mxu0 0.0
        %1389 = vmatpush1.msra.mxu0 0.0
        %1390 = vmatprep.subr.mxu0 0.0
        %1391 = vmatpush1.msra.mxu0 0.0
        %1392 = vmatprep.subr.mxu0 0.0
        %1393 = vmatpush1.msra.mxu0 0.0
        %1394 = vmatprep.mubr.f32.mxu0 0.0
        %1395 = vmatmul.mubr.f32.gmra.mrb[0].mxu0 %v1328
        %v1396 = vpop.f32.mrb[0].mxu0
        %v1397 = vadd.f32 0.0, %v1396
        %v1398 = vpop.f32.mrb[0].mxu0
        %v1399 = vadd.f32 0.0, %v1398
        %1400 = vdwg.mxu0
        %1401 = vmatprep.subr.mxu0 %v1294
        %1402 = vmatpush1.msra.mxu0 %v1293
        %1403 = vmatprep.subr.mxu0 %v1298
        %1404 = vmatpush1.msra.mxu0 %v1297
        %1405 = vmatprep.subr.mxu0 %v1302
        %1406 = vmatpush1.msra.mxu0 %v1301
        %1407 = vmatprep.subr.mxu0 %v1306
        %1408 = vmatpush1.msra.mxu0 %v1305
        %1409 = vmatprep.subr.mxu0 %v1310
        %1410 = vmatpush1.msra.mxu0 %v1309
        %1411 = vmatprep.subr.mxu0 %v1314
        %1412 = vmatpush1.msra.mxu0 %v1313
        %1413 = vmatprep.subr.mxu0 %v1318
        %1414 = vmatpush1.msra.mxu0 %v1317
        %1415 = vmatprep.subr.mxu0 %v1322
        %1416 = vmatpush1.msra.mxu0 %v1321
        %1417 = vmatprep.subr.mxu0 %v1326
        %1418 = vmatpush1.msra.mxu0 %v1325
        %1419 = vmatprep.subr.mxu0 0.0
        %1420 = vmatpush1.msra.mxu0 0.0
        %1421 = vmatprep.subr.mxu0 0.0
        %1422 = vmatpush1.msra.mxu0 0.0
        %1423 = vmatprep.subr.mxu0 0.0
        %1424 = vmatpush1.msra.mxu0 0.0
        %1425 = vmatprep.subr.mxu0 0.0
        %1426 = vmatpush1.msra.mxu0 0.0
        %1427 = vmatprep.subr.mxu0 0.0
        %1428 = vmatpush1.msra.mxu0 0.0
        %1429 = vmatprep.subr.mxu0 0.0
        %1430 = vmatpush1.msra.mxu0 0.0
        %1431 = vmatprep.subr.mxu0 0.0
        %1432 = vmatpush1.msra.mxu0 0.0
        %1433 = vmatprep.subr.mxu0 0.0
        %1434 = vmatpush1.msra.mxu0 0.0
        %1435 = vmatprep.subr.mxu0 0.0
        %1436 = vmatpush1.msra.mxu0 0.0
        %1437 = vmatprep.subr.mxu0 0.0
        %1438 = vmatpush1.msra.mxu0 0.0
        %1439 = vmatprep.subr.mxu0 0.0
        %1440 = vmatpush1.msra.mxu0 0.0
        %1441 = vmatprep.subr.mxu0 0.0
        %1442 = vmatpush1.msra.mxu0 0.0
        %1443 = vmatprep.subr.mxu0 0.0
        %1444 = vmatpush1.msra.mxu0 0.0
        %1445 = vmatprep.subr.mxu0 0.0
        %1446 = vmatpush1.msra.mxu0 0.0
        %1447 = vmatprep.subr.mxu0 0.0
        %1448 = vmatpush1.msra.mxu0 0.0
        %1449 = vmatprep.subr.mxu0 0.0
        %1450 = vmatpush1.msra.mxu0 0.0
        %1451 = vmatprep.subr.mxu0 0.0
        %1452 = vmatpush1.msra.mxu0 0.0
        %1453 = vmatprep.subr.mxu0 0.0
        %1454 = vmatpush1.msra.mxu0 0.0
        %1455 = vmatprep.subr.mxu0 0.0
        %1456 = vmatpush1.msra.mxu0 0.0
        %1457 = vmatprep.subr.mxu0 0.0
        %1458 = vmatpush1.msra.mxu0 0.0
        %1459 = vmatprep.subr.mxu0 0.0
        %1460 = vmatpush1.msra.mxu0 0.0
        %1461 = vmatprep.subr.mxu0 0.0
        %1462 = vmatpush1.msra.mxu0 0.0
        %1463 = vmatprep.subr.mxu0 0.0
        %1464 = vmatpush1.msra.mxu0 0.0
        %1465 = vmatprep.mubr.f32.mxu0 0.0
        %1466 = vmatmul.mubr.f32.gmra.mrb[0].mxu0 %v1328
        %v1467 = vpop.f32.mrb[0].mxu0
        %v1468 = vadd.f32 0.0, %v1467
        %v1469 = vpop.f32.mrb[0].mxu0
        %v1470 = vadd.f32 0.0, %v1469
        %1471 = vdwg.mxu0
        %v1472 = vadd.f32 %v1397, %v1399
        %1473 = vadd.xlane.f32.xlu0 %v1472
        %v1474 = vpop.xlane.xlu0 %1473
        %v1475 = vmul.f32 %v1474, %v290
        %v1476 = vsub.f32 %v1397, %v1475
        %v1477 = vsub.f32 %v1399, %v1475
        %v1478 = vmul.f32 %v1476, %v1476
        %v1479 = vmul.f32 %v1477, %v1477
        %v1480 = vadd.f32 %v1478, %v1479
        %1481 = vadd.xlane.f32.xlu0 %v1480
        %v1482 = vpop.xlane.xlu0 %1481
        %v1483 = vmul.f32 %v1482, %v290
        %v1484 = vadd.f32 %v1483, 1e-05
        %v1485 = vrsqrt.pop %v1484
        %v1486 = vmul.f32 %v1476, %v1485
        %v1487 = vmul.f32 %v1477, %v1485
        %v1488 = vmax.f32 %v1486, 0.0
        %v1489 = vmax.f32 %v1487, 0.0
        %1490 = vst [vmem:[#allocation2] sm:$0xff] %v1488
        %1491 = vst [vmem:[#allocation2 + $0x8] sm:$0xff] %v1489
        %v1492 = vadd.f32 %v1468, %v1470
        %1493 = vadd.xlane.f32.xlu0 %v1492
        %v1494 = vpop.xlane.xlu0 %1493
        %v1495 = vmul.f32 %v1494, %v290
        %v1496 = vsub.f32 %v1468, %v1495
        %v1497 = vsub.f32 %v1470, %v1495
        %v1498 = vmul.f32 %v1496, %v1496
        %v1499 = vmul.f32 %v1497, %v1497
        %v1500 = vadd.f32 %v1498, %v1499
        %1501 = vadd.xlane.f32.xlu0 %v1500
        %v1502 = vpop.xlane.xlu0 %1501
        %v1503 = vmul.f32 %v1502, %v290
        %v1504 = vadd.f32 %v1503, 1e-05
        %v1505 = vrsqrt.pop %v1504
        %v1506 = vmul.f32 %v1496, %v1505
        %v1507 = vmul.f32 %v1497, %v1505
        %v1508 = vmax.f32 %v1506, 0.0
        %v1509 = vmax.f32 %v1507, 0.0
        %1510 = vst [vmem:[#allocation2 + $0x10] sm:$0xff] %v1508
        %1511 = vst [vmem:[#allocation2 + $0x18] sm:$0xff] %v1509
        %v1512 = vld [vmem:[#allocation2] sm:$0xff]
        %v1513 = vld [vmem:[#allocation2 + $0x8] sm:$0xff]
        %v1514 = vld [vmem:[#allocation2 + $0x10] sm:$0xff]
        %v1515 = vld [vmem:[#allocation2 + $0x18] sm:$0xff]
        %1516 = vrot.lane.b32.xlu0 %v1512, 17
        %v1517 = vpop.permute.xlu0 %1516
        %1518 = vrot.lane.b32.xlu0 %v1513, 17
        %v1519 = vpop.permute.xlu0 %1518
        %1520 = vrot.lane.b32.xlu0 %v1514, 17
        %v1521 = vpop.permute.xlu0 %1520
        %1522 = vrot.lane.b32.xlu0 %v1515, 17
        %v1523 = vpop.permute.xlu0 %1522
        %v1524 = vsel %vm344, %v1521, %v1523
        %v1525 = vsel %vm344, %v1519, %v1521
        %v1526 = vsel %vm344, %v1517, %v1519
        %v1527 = vsel %vm344, %v1523, %v1517
        %v1528 = vld [vmem:[#allocation4] ss:$8 sm:$0xf]
        %v1530 = vlaneseq
        %v1531 = vshrl.u32 %v1530, 7
        %v1532 = vsub.s32 0, %v1531
        %v1533 = vrot.slane %v1528, %v1532
        %v1534 = vlaneseq
        %v1535 = vshrl.u32 %v1534, 7
        %v1536 = vsub.s32 1, %v1535
        %v1537 = vrot.slane %v1528, %v1536
        %v1538 = vlaneseq
        %v1539 = vshrl.u32 %v1538, 7
        %v1540 = vsub.s32 2, %v1539
        %v1541 = vrot.slane %v1528, %v1540
        %v1542 = vlaneseq
        %v1543 = vshrl.u32 %v1542, 7
        %v1544 = vsub.s32 3, %v1543
        %v1545 = vrot.slane %v1528, %v1544
        %v1550 = vmul.f32 %v1527, %v1533
        %v1551 = vmul.f32 %v1526, %v1537
        %v1552 = vmul.f32 %v1525, %v1541
        %v1553 = vmul.f32 %v1524, %v1545
        %1554 = vst [vmem:[#allocation3] sm:$0xff] %v1550
        %1555 = vst [vmem:[#allocation3 + $0x8] sm:$0xff] %v1551
        %1556 = vst [vmem:[#allocation3 + $0x10] sm:$0xff] %v1552
        %1557 = vst [vmem:[#allocation3 + $0x18] sm:$0xff] %v1553
        %1558 = vrot.lane.b32.xlu0 %v1512, 16
        %v1559 = vpop.permute.xlu0 %1558
        %1560 = vrot.lane.b32.xlu0 %v1513, 16
        %v1561 = vpop.permute.xlu0 %1560
        %1562 = vrot.lane.b32.xlu0 %v1514, 16
        %v1563 = vpop.permute.xlu0 %1562
        %1564 = vrot.lane.b32.xlu0 %v1515, 16
        %v1565 = vpop.permute.xlu0 %1564
        %v1566 = vsel %vm387, %v1563, %v1565
        %v1567 = vsel %vm387, %v1561, %v1563
        %v1568 = vsel %vm387, %v1559, %v1561
        %v1569 = vsel %vm387, %v1565, %v1559
        %v1570 = vld [vmem:[%s392] ss:$8 sm:$0xf]
        %v1572 = vlaneseq
        %v1573 = vshrl.u32 %v1572, 7
        %v1574 = vsub.s32 0, %v1573
        %v1575 = vrot.slane %v1570, %v1574
        %v1576 = vlaneseq
        %v1577 = vshrl.u32 %v1576, 7
        %v1578 = vsub.s32 1, %v1577
        %v1579 = vrot.slane %v1570, %v1578
        %v1580 = vlaneseq
        %v1581 = vshrl.u32 %v1580, 7
        %v1582 = vsub.s32 2, %v1581
        %v1583 = vrot.slane %v1570, %v1582
        %v1584 = vlaneseq
        %v1585 = vshrl.u32 %v1584, 7
        %v1586 = vsub.s32 3, %v1585
        %v1587 = vrot.slane %v1570, %v1586
        %v1592 = vmul.f32 %v1569, %v1575
        %v1593 = vmul.f32 %v1568, %v1579
        %v1594 = vmul.f32 %v1567, %v1583
        %v1595 = vmul.f32 %v1566, %v1587
        %1596 = vst [vmem:[#allocation3 + $0x20] sm:$0xff] %v1592
        %1597 = vst [vmem:[#allocation3 + $0x28] sm:$0xff] %v1593
        %1598 = vst [vmem:[#allocation3 + $0x30] sm:$0xff] %v1594
        %1599 = vst [vmem:[#allocation3 + $0x38] sm:$0xff] %v1595
        %1600 = vrot.lane.b32.xlu0 %v1512, 15
        %v1601 = vpop.permute.xlu0 %1600
        %1602 = vrot.lane.b32.xlu0 %v1513, 15
        %v1603 = vpop.permute.xlu0 %1602
        %1604 = vrot.lane.b32.xlu0 %v1514, 15
        %v1605 = vpop.permute.xlu0 %1604
        %1606 = vrot.lane.b32.xlu0 %v1515, 15
        %v1607 = vpop.permute.xlu0 %1606
        %v1608 = vsel %vm431, %v1605, %v1607
        %v1609 = vsel %vm431, %v1603, %v1605
        %v1610 = vsel %vm431, %v1601, %v1603
        %v1611 = vsel %vm431, %v1607, %v1601
        %v1612 = vld [vmem:[%s436] ss:$8 sm:$0xf]
        %v1614 = vlaneseq
        %v1615 = vshrl.u32 %v1614, 7
        %v1616 = vsub.s32 0, %v1615
        %v1617 = vrot.slane %v1612, %v1616
        %v1618 = vlaneseq
        %v1619 = vshrl.u32 %v1618, 7
        %v1620 = vsub.s32 1, %v1619
        %v1621 = vrot.slane %v1612, %v1620
        %v1622 = vlaneseq
        %v1623 = vshrl.u32 %v1622, 7
        %v1624 = vsub.s32 2, %v1623
        %v1625 = vrot.slane %v1612, %v1624
        %v1626 = vlaneseq
        %v1627 = vshrl.u32 %v1626, 7
        %v1628 = vsub.s32 3, %v1627
        %v1629 = vrot.slane %v1612, %v1628
        %v1634 = vmul.f32 %v1611, %v1617
        %v1635 = vmul.f32 %v1610, %v1621
        %v1636 = vmul.f32 %v1609, %v1625
        %v1637 = vmul.f32 %v1608, %v1629
        %1638 = vst [vmem:[#allocation3 + $0x40] sm:$0xff] %v1634
        %1639 = vst [vmem:[#allocation3 + $0x48] sm:$0xff] %v1635
        %1640 = vst [vmem:[#allocation3 + $0x50] sm:$0xff] %v1636
        %1641 = vst [vmem:[#allocation3 + $0x58] sm:$0xff] %v1637
        %1642 = vrot.lane.b32.xlu0 %v1512, 1
        %v1643 = vpop.permute.xlu0 %1642
        %1644 = vrot.lane.b32.xlu0 %v1513, 1
        %v1645 = vpop.permute.xlu0 %1644
        %1646 = vrot.lane.b32.xlu0 %v1514, 1
        %v1647 = vpop.permute.xlu0 %1646
        %1648 = vrot.lane.b32.xlu0 %v1515, 1
        %v1649 = vpop.permute.xlu0 %1648
        %v1650 = vsel %vm475, %v1647, %v1649
        %v1651 = vsel %vm475, %v1645, %v1647
        %v1652 = vsel %vm475, %v1643, %v1645
        %v1653 = vsel %vm475, %v1649, %v1643
        %v1654 = vld [vmem:[%s480] ss:$8 sm:$0xf]
        %v1656 = vlaneseq
        %v1657 = vshrl.u32 %v1656, 7
        %v1658 = vsub.s32 0, %v1657
        %v1659 = vrot.slane %v1654, %v1658
        %v1660 = vlaneseq
        %v1661 = vshrl.u32 %v1660, 7
        %v1662 = vsub.s32 1, %v1661
        %v1663 = vrot.slane %v1654, %v1662
        %v1664 = vlaneseq
        %v1665 = vshrl.u32 %v1664, 7
        %v1666 = vsub.s32 2, %v1665
        %v1667 = vrot.slane %v1654, %v1666
        %v1668 = vlaneseq
        %v1669 = vshrl.u32 %v1668, 7
        %v1670 = vsub.s32 3, %v1669
        %v1671 = vrot.slane %v1654, %v1670
        %v1676 = vmul.f32 %v1653, %v1659
        %v1677 = vmul.f32 %v1652, %v1663
        %v1678 = vmul.f32 %v1651, %v1667
        %v1679 = vmul.f32 %v1650, %v1671
        %1680 = vst [vmem:[#allocation3 + $0x60] sm:$0xff] %v1676
        %1681 = vst [vmem:[#allocation3 + $0x68] sm:$0xff] %v1677
        %1682 = vst [vmem:[#allocation3 + $0x70] sm:$0xff] %v1678
        %1683 = vst [vmem:[#allocation3 + $0x78] sm:$0xff] %v1679
        %1684 = vst [vmem:[#allocation3 + $0x80] sm:$0xff] %v1512
        %1685 = vst [vmem:[#allocation3 + $0x88] sm:$0xff] %v1513
        %1686 = vst [vmem:[#allocation3 + $0x90] sm:$0xff] %v1514
        %1687 = vst [vmem:[#allocation3 + $0x98] sm:$0xff] %v1515
        %1688 = vrot.lane.b32.xlu0 %v1512, 127
        %v1689 = vpop.permute.xlu0 %1688
        %1690 = vrot.lane.b32.xlu0 %v1513, 127
        %v1691 = vpop.permute.xlu0 %1690
        %1692 = vrot.lane.b32.xlu0 %v1514, 127
        %v1693 = vpop.permute.xlu0 %1692
        %1694 = vrot.lane.b32.xlu0 %v1515, 127
        %v1695 = vpop.permute.xlu0 %1694
        %v1696 = vsel %vm523, %v1693, %v1695
        %v1697 = vsel %vm523, %v1691, %v1693
        %v1698 = vsel %vm523, %v1689, %v1691
        %v1699 = vsel %vm523, %v1695, %v1689
        %v1700 = vld [vmem:[%s528] ss:$8 sm:$0xf]
        %v1702 = vlaneseq
        %v1703 = vshrl.u32 %v1702, 7
        %v1704 = vsub.s32 0, %v1703
        %v1705 = vrot.slane %v1700, %v1704
        %v1706 = vlaneseq
        %v1707 = vshrl.u32 %v1706, 7
        %v1708 = vsub.s32 1, %v1707
        %v1709 = vrot.slane %v1700, %v1708
        %v1710 = vlaneseq
        %v1711 = vshrl.u32 %v1710, 7
        %v1712 = vsub.s32 2, %v1711
        %v1713 = vrot.slane %v1700, %v1712
        %v1714 = vlaneseq
        %v1715 = vshrl.u32 %v1714, 7
        %v1716 = vsub.s32 3, %v1715
        %v1717 = vrot.slane %v1700, %v1716
        %v1722 = vmul.f32 %v1698, %v1705
        %v1723 = vmul.f32 %v1697, %v1709
        %v1724 = vmul.f32 %v1696, %v1713
        %v1725 = vmul.f32 %v1699, %v1717
        %1726 = vst [vmem:[#allocation3 + $0xa0] sm:$0xff] %v1722
        %1727 = vst [vmem:[#allocation3 + $0xa8] sm:$0xff] %v1723
        %1728 = vst [vmem:[#allocation3 + $0xb0] sm:$0xff] %v1724
        %1729 = vst [vmem:[#allocation3 + $0xb8] sm:$0xff] %v1725
        %1730 = vrot.lane.b32.xlu0 %v1512, 113
        %v1731 = vpop.permute.xlu0 %1730
        %1732 = vrot.lane.b32.xlu0 %v1513, 113
        %v1733 = vpop.permute.xlu0 %1732
        %1734 = vrot.lane.b32.xlu0 %v1514, 113
        %v1735 = vpop.permute.xlu0 %1734
        %1736 = vrot.lane.b32.xlu0 %v1515, 113
        %v1737 = vpop.permute.xlu0 %1736
        %v1738 = vsel %vm567, %v1735, %v1737
        %v1739 = vsel %vm567, %v1733, %v1735
        %v1740 = vsel %vm567, %v1731, %v1733
        %v1741 = vsel %vm567, %v1737, %v1731
        %v1742 = vld [vmem:[%s572] ss:$8 sm:$0xf]
        %v1744 = vlaneseq
        %v1745 = vshrl.u32 %v1744, 7
        %v1746 = vsub.s32 0, %v1745
        %v1747 = vrot.slane %v1742, %v1746
        %v1748 = vlaneseq
        %v1749 = vshrl.u32 %v1748, 7
        %v1750 = vsub.s32 1, %v1749
        %v1751 = vrot.slane %v1742, %v1750
        %v1752 = vlaneseq
        %v1753 = vshrl.u32 %v1752, 7
        %v1754 = vsub.s32 2, %v1753
        %v1755 = vrot.slane %v1742, %v1754
        %v1756 = vlaneseq
        %v1757 = vshrl.u32 %v1756, 7
        %v1758 = vsub.s32 3, %v1757
        %v1759 = vrot.slane %v1742, %v1758
        %v1764 = vmul.f32 %v1740, %v1747
        %v1765 = vmul.f32 %v1739, %v1751
        %v1766 = vmul.f32 %v1738, %v1755
        %v1767 = vmul.f32 %v1741, %v1759
        %1768 = vst [vmem:[#allocation3 + $0xc0] sm:$0xff] %v1764
        %1769 = vst [vmem:[#allocation3 + $0xc8] sm:$0xff] %v1765
        %1770 = vst [vmem:[#allocation3 + $0xd0] sm:$0xff] %v1766
        %1771 = vst [vmem:[#allocation3 + $0xd8] sm:$0xff] %v1767
        %1772 = vrot.lane.b32.xlu0 %v1512, 112
        %v1773 = vpop.permute.xlu0 %1772
        %1774 = vrot.lane.b32.xlu0 %v1513, 112
        %v1775 = vpop.permute.xlu0 %1774
        %1776 = vrot.lane.b32.xlu0 %v1514, 112
        %v1777 = vpop.permute.xlu0 %1776
        %1778 = vrot.lane.b32.xlu0 %v1515, 112
        %v1779 = vpop.permute.xlu0 %1778
        %v1780 = vsel %vm611, %v1777, %v1779
        %v1781 = vsel %vm611, %v1775, %v1777
        %v1782 = vsel %vm611, %v1773, %v1775
        %v1783 = vsel %vm611, %v1779, %v1773
        %v1784 = vld [vmem:[%s616] ss:$8 sm:$0xf]
        %v1786 = vlaneseq
        %v1787 = vshrl.u32 %v1786, 7
        %v1788 = vsub.s32 0, %v1787
        %v1789 = vrot.slane %v1784, %v1788
        %v1790 = vlaneseq
        %v1791 = vshrl.u32 %v1790, 7
        %v1792 = vsub.s32 1, %v1791
        %v1793 = vrot.slane %v1784, %v1792
        %v1794 = vlaneseq
        %v1795 = vshrl.u32 %v1794, 7
        %v1796 = vsub.s32 2, %v1795
        %v1797 = vrot.slane %v1784, %v1796
        %v1798 = vlaneseq
        %v1799 = vshrl.u32 %v1798, 7
        %v1800 = vsub.s32 3, %v1799
        %v1801 = vrot.slane %v1784, %v1800
        %v1806 = vmul.f32 %v1782, %v1789
        %v1807 = vmul.f32 %v1781, %v1793
        %v1808 = vmul.f32 %v1780, %v1797
        %v1809 = vmul.f32 %v1783, %v1801
        %1810 = vst [vmem:[#allocation3 + $0xe0] sm:$0xff] %v1806
        %1811 = vst [vmem:[#allocation3 + $0xe8] sm:$0xff] %v1807
        %1812 = vst [vmem:[#allocation3 + $0xf0] sm:$0xff] %v1808
        %1813 = vst [vmem:[#allocation3 + $0xf8] sm:$0xff] %v1809
        %1814 = vrot.lane.b32.xlu0 %v1512, 111
        %v1815 = vpop.permute.xlu0 %1814
        %1816 = vrot.lane.b32.xlu0 %v1513, 111
        %v1817 = vpop.permute.xlu0 %1816
        %1818 = vrot.lane.b32.xlu0 %v1514, 111
        %v1819 = vpop.permute.xlu0 %1818
        %1820 = vrot.lane.b32.xlu0 %v1515, 111
        %v1821 = vpop.permute.xlu0 %1820
        %v1822 = vsel %vm655, %v1819, %v1821
        %v1823 = vsel %vm655, %v1817, %v1819
        %v1824 = vsel %vm655, %v1815, %v1817
        %v1825 = vsel %vm655, %v1821, %v1815
        %v1826 = vld [vmem:[%s660] ss:$8 sm:$0xf]
        %v1828 = vlaneseq
        %v1829 = vshrl.u32 %v1828, 7
        %v1830 = vsub.s32 0, %v1829
        %v1831 = vrot.slane %v1826, %v1830
        %v1832 = vlaneseq
        %v1833 = vshrl.u32 %v1832, 7
        %v1834 = vsub.s32 1, %v1833
        %v1835 = vrot.slane %v1826, %v1834
        %v1836 = vlaneseq
        %v1837 = vshrl.u32 %v1836, 7
        %v1838 = vsub.s32 2, %v1837
        %v1839 = vrot.slane %v1826, %v1838
        %v1840 = vlaneseq
        %v1841 = vshrl.u32 %v1840, 7
        %v1842 = vsub.s32 3, %v1841
        %v1843 = vrot.slane %v1826, %v1842
        %v1848 = vmul.f32 %v1824, %v1831
        %v1849 = vmul.f32 %v1823, %v1835
        %v1850 = vmul.f32 %v1822, %v1839
        %v1851 = vmul.f32 %v1825, %v1843
        %1852 = vst [vmem:[#allocation3 + $0x100] sm:$0xff] %v1848
        %1853 = vst [vmem:[#allocation3 + $0x108] sm:$0xff] %v1849
        %1854 = vst [vmem:[#allocation3 + $0x110] sm:$0xff] %v1850
        %1855 = vst [vmem:[#allocation3 + $0x118] sm:$0xff] %v1851
        %v1856 = vld [vmem:[#allocation10] sm:$0xff]
        %v1857 = vld [vmem:[#allocation3] sm:$0xff]
        %v1858 = vld [vmem:[#allocation3 + $0x8] sm:$0xff]
        %v1859 = vld [vmem:[#allocation3 + $0x10] sm:$0xff]
        %v1860 = vld [vmem:[#allocation3 + $0x18] sm:$0xff]
        %v1861 = vld [vmem:[#allocation3 + $0x20] sm:$0xff]
        %v1862 = vld [vmem:[#allocation3 + $0x28] sm:$0xff]
        %v1863 = vld [vmem:[#allocation3 + $0x30] sm:$0xff]
        %v1864 = vld [vmem:[#allocation3 + $0x38] sm:$0xff]
        %v1865 = vld [vmem:[#allocation3 + $0x40] sm:$0xff]
        %v1866 = vld [vmem:[#allocation3 + $0x48] sm:$0xff]
        %v1867 = vld [vmem:[#allocation3 + $0x50] sm:$0xff]
        %v1868 = vld [vmem:[#allocation3 + $0x58] sm:$0xff]
        %v1869 = vld [vmem:[#allocation3 + $0x60] sm:$0xff]
        %v1870 = vld [vmem:[#allocation3 + $0x68] sm:$0xff]
        %v1871 = vld [vmem:[#allocation3 + $0x70] sm:$0xff]
        %v1872 = vld [vmem:[#allocation3 + $0x78] sm:$0xff]
        %v1873 = vld [vmem:[#allocation3 + $0x80] sm:$0xff]
        %v1874 = vld [vmem:[#allocation3 + $0x88] sm:$0xff]
        %v1875 = vld [vmem:[#allocation3 + $0x90] sm:$0xff]
        %v1876 = vld [vmem:[#allocation3 + $0x98] sm:$0xff]
        %v1877 = vld [vmem:[#allocation3 + $0xa0] sm:$0xff]
        %v1878 = vld [vmem:[#allocation3 + $0xa8] sm:$0xff]
        %v1879 = vld [vmem:[#allocation3 + $0xb0] sm:$0xff]
        %v1880 = vld [vmem:[#allocation3 + $0xb8] sm:$0xff]
        %v1881 = vld [vmem:[#allocation3 + $0xc0] sm:$0xff]
        %v1882 = vld [vmem:[#allocation3 + $0xc8] sm:$0xff]
        %v1883 = vld [vmem:[#allocation3 + $0xd0] sm:$0xff]
        %v1884 = vld [vmem:[#allocation3 + $0xd8] sm:$0xff]
        %v1885 = vld [vmem:[#allocation3 + $0xe0] sm:$0xff]
        %v1886 = vld [vmem:[#allocation3 + $0xe8] sm:$0xff]
        %v1887 = vld [vmem:[#allocation3 + $0xf0] sm:$0xff]
        %v1888 = vld [vmem:[#allocation3 + $0xf8] sm:$0xff]
        %v1889 = vld [vmem:[#allocation3 + $0x100] sm:$0xff]
        %v1890 = vld [vmem:[#allocation3 + $0x108] sm:$0xff]
        %v1891 = vld [vmem:[#allocation3 + $0x110] sm:$0xff]
        %v1892 = vld [vmem:[#allocation3 + $0x118] sm:$0xff]
        %v1894 = vsel %vm730, %v1856, 0
        %1896 = vmatprep.subr.mxu0 %v1858
        %1897 = vmatpush1.msra.mxu0 %v1857
        %1898 = vmatprep.subr.mxu0 %v1862
        %1899 = vmatpush1.msra.mxu0 %v1861
        %1900 = vmatprep.subr.mxu0 %v1866
        %1901 = vmatpush1.msra.mxu0 %v1865
        %1902 = vmatprep.subr.mxu0 %v1870
        %1903 = vmatpush1.msra.mxu0 %v1869
        %1904 = vmatprep.subr.mxu0 %v1874
        %1905 = vmatpush1.msra.mxu0 %v1873
        %1906 = vmatprep.subr.mxu0 %v1878
        %1907 = vmatpush1.msra.mxu0 %v1877
        %1908 = vmatprep.subr.mxu0 %v1882
        %1909 = vmatpush1.msra.mxu0 %v1881
        %1910 = vmatprep.subr.mxu0 %v1886
        %1911 = vmatpush1.msra.mxu0 %v1885
        %1912 = vmatprep.subr.mxu0 %v1890
        %1913 = vmatpush1.msra.mxu0 %v1889
        %1914 = vmatprep.subr.mxu0 0.0
        %1915 = vmatpush1.msra.mxu0 0.0
        %1916 = vmatprep.subr.mxu0 0.0
        %1917 = vmatpush1.msra.mxu0 0.0
        %1918 = vmatprep.subr.mxu0 0.0
        %1919 = vmatpush1.msra.mxu0 0.0
        %1920 = vmatprep.subr.mxu0 0.0
        %1921 = vmatpush1.msra.mxu0 0.0
        %1922 = vmatprep.subr.mxu0 0.0
        %1923 = vmatpush1.msra.mxu0 0.0
        %1924 = vmatprep.subr.mxu0 0.0
        %1925 = vmatpush1.msra.mxu0 0.0
        %1926 = vmatprep.subr.mxu0 0.0
        %1927 = vmatpush1.msra.mxu0 0.0
        %1928 = vmatprep.subr.mxu0 0.0
        %1929 = vmatpush1.msra.mxu0 0.0
        %1930 = vmatprep.subr.mxu0 0.0
        %1931 = vmatpush1.msra.mxu0 0.0
        %1932 = vmatprep.subr.mxu0 0.0
        %1933 = vmatpush1.msra.mxu0 0.0
        %1934 = vmatprep.subr.mxu0 0.0
        %1935 = vmatpush1.msra.mxu0 0.0
        %1936 = vmatprep.subr.mxu0 0.0
        %1937 = vmatpush1.msra.mxu0 0.0
        %1938 = vmatprep.subr.mxu0 0.0
        %1939 = vmatpush1.msra.mxu0 0.0
        %1940 = vmatprep.subr.mxu0 0.0
        %1941 = vmatpush1.msra.mxu0 0.0
        %1942 = vmatprep.subr.mxu0 0.0
        %1943 = vmatpush1.msra.mxu0 0.0
        %1944 = vmatprep.subr.mxu0 0.0
        %1945 = vmatpush1.msra.mxu0 0.0
        %1946 = vmatprep.subr.mxu0 0.0
        %1947 = vmatpush1.msra.mxu0 0.0
        %1948 = vmatprep.subr.mxu0 0.0
        %1949 = vmatpush1.msra.mxu0 0.0
        %1950 = vmatprep.subr.mxu0 0.0
        %1951 = vmatpush1.msra.mxu0 0.0
        %1952 = vmatprep.subr.mxu0 0.0
        %1953 = vmatpush1.msra.mxu0 0.0
        %1954 = vmatprep.subr.mxu0 0.0
        %1955 = vmatpush1.msra.mxu0 0.0
        %1956 = vmatprep.subr.mxu0 0.0
        %1957 = vmatpush1.msra.mxu0 0.0
        %1958 = vmatprep.subr.mxu0 0.0
        %1959 = vmatpush1.msra.mxu0 0.0
        %1960 = vmatprep.mubr.f32.mxu0 0.0
        %1961 = vmatmul.mubr.f32.gmra.mrb[0].mxu0 %v1894
        %v1962 = vpop.f32.mrb[0].mxu0
        %v1963 = vadd.f32 0.0, %v1962
        %v1964 = vpop.f32.mrb[0].mxu0
        %v1965 = vadd.f32 0.0, %v1964
        %1966 = vdwg.mxu0
        %1967 = vmatprep.subr.mxu0 %v1860
        %1968 = vmatpush1.msra.mxu0 %v1859
        %1969 = vmatprep.subr.mxu0 %v1864
        %1970 = vmatpush1.msra.mxu0 %v1863
        %1971 = vmatprep.subr.mxu0 %v1868
        %1972 = vmatpush1.msra.mxu0 %v1867
        %1973 = vmatprep.subr.mxu0 %v1872
        %1974 = vmatpush1.msra.mxu0 %v1871
        %1975 = vmatprep.subr.mxu0 %v1876
        %1976 = vmatpush1.msra.mxu0 %v1875
        %1977 = vmatprep.subr.mxu0 %v1880
        %1978 = vmatpush1.msra.mxu0 %v1879
        %1979 = vmatprep.subr.mxu0 %v1884
        %1980 = vmatpush1.msra.mxu0 %v1883
        %1981 = vmatprep.subr.mxu0 %v1888
        %1982 = vmatpush1.msra.mxu0 %v1887
        %1983 = vmatprep.subr.mxu0 %v1892
        %1984 = vmatpush1.msra.mxu0 %v1891
        %1985 = vmatprep.subr.mxu0 0.0
        %1986 = vmatpush1.msra.mxu0 0.0
        %1987 = vmatprep.subr.mxu0 0.0
        %1988 = vmatpush1.msra.mxu0 0.0
        %1989 = vmatprep.subr.mxu0 0.0
        %1990 = vmatpush1.msra.mxu0 0.0
        %1991 = vmatprep.subr.mxu0 0.0
        %1992 = vmatpush1.msra.mxu0 0.0
        %1993 = vmatprep.subr.mxu0 0.0
        %1994 = vmatpush1.msra.mxu0 0.0
        %1995 = vmatprep.subr.mxu0 0.0
        %1996 = vmatpush1.msra.mxu0 0.0
        %1997 = vmatprep.subr.mxu0 0.0
        %1998 = vmatpush1.msra.mxu0 0.0
        %1999 = vmatprep.subr.mxu0 0.0
        %2000 = vmatpush1.msra.mxu0 0.0
        %2001 = vmatprep.subr.mxu0 0.0
        %2002 = vmatpush1.msra.mxu0 0.0
        %2003 = vmatprep.subr.mxu0 0.0
        %2004 = vmatpush1.msra.mxu0 0.0
        %2005 = vmatprep.subr.mxu0 0.0
        %2006 = vmatpush1.msra.mxu0 0.0
        %2007 = vmatprep.subr.mxu0 0.0
        %2008 = vmatpush1.msra.mxu0 0.0
        %2009 = vmatprep.subr.mxu0 0.0
        %2010 = vmatpush1.msra.mxu0 0.0
        %2011 = vmatprep.subr.mxu0 0.0
        %2012 = vmatpush1.msra.mxu0 0.0
        %2013 = vmatprep.subr.mxu0 0.0
        %2014 = vmatpush1.msra.mxu0 0.0
        %2015 = vmatprep.subr.mxu0 0.0
        %2016 = vmatpush1.msra.mxu0 0.0
        %2017 = vmatprep.subr.mxu0 0.0
        %2018 = vmatpush1.msra.mxu0 0.0
        %2019 = vmatprep.subr.mxu0 0.0
        %2020 = vmatpush1.msra.mxu0 0.0
        %2021 = vmatprep.subr.mxu0 0.0
        %2022 = vmatpush1.msra.mxu0 0.0
        %2023 = vmatprep.subr.mxu0 0.0
        %2024 = vmatpush1.msra.mxu0 0.0
        %2025 = vmatprep.subr.mxu0 0.0
        %2026 = vmatpush1.msra.mxu0 0.0
        %2027 = vmatprep.subr.mxu0 0.0
        %2028 = vmatpush1.msra.mxu0 0.0
        %2029 = vmatprep.subr.mxu0 0.0
        %2030 = vmatpush1.msra.mxu0 0.0
        %2031 = vmatprep.mubr.f32.mxu0 0.0
        %2032 = vmatmul.mubr.f32.gmra.mrb[0].mxu0 %v1894
        %v2033 = vpop.f32.mrb[0].mxu0
        %v2034 = vadd.f32 0.0, %v2033
        %v2035 = vpop.f32.mrb[0].mxu0
        %v2036 = vadd.f32 0.0, %v2035
        %2037 = vdwg.mxu0
        %v2042 = vrot.slane %v1963, 4
        %v2043 = vrot.slane %v1965, 4
        %v2044 = vrot.slane %v2034, 4
        %v2045 = vrot.slane %v2036, 4
        %vm2050 = vcmask 1043456
        %v2051 = vsel %vm2050, %v1397, %v2042
        %v2052 = vsel %vm2050, %v1399, %v2043
        %v2053 = vsel %vm2050, %v1468, %v2044
        %v2054 = vsel %vm2050, %v1470, %v2045
        %v2055 = vadd.f32 %v807, %v813
        %v2056 = vadd.f32 %v809, %v815
        %v2057 = vadd.f32 %v890, %v896
        %v2058 = vadd.f32 %v892, %v898
        %v2059 = vadd.f32 %v2051, %v819
        %v2060 = vadd.f32 %v2052, %v821
        %v2061 = vadd.f32 %v2053, %v902
        %v2062 = vadd.f32 %v2054, %v904
        %2063 = vst [vmem:[%s282] sm:$0xff] %v2055
        %2064 = vst [vmem:[%s282 + $0x8] sm:$0xff] %v2056
        %2065 = vst [vmem:[%s282 + $0x10] sm:$0xff] %v2057
        %2066 = vst [vmem:[%s282 + $0x18] sm:$0xff] %v2058
        %2067 = vst [vmem:[%s282 + $0x20] sm:$0xff] %v2059
        %2068 = vst [vmem:[%s282 + $0x28] sm:$0xff] %v2060
        %2069 = vst [vmem:[%s282 + $0x30] sm:$0xff] %v2061
        %2070 = vst [vmem:[%s282 + $0x38] sm:$0xff] %v2062
        %s2071 = sand.u32 %s142, 1
        %s2072 = scalar_lea.sflag [#allocation6], %s2071
        %s2073 = sand.u32 %s142, 1
        %s2074 = smul.addr %s2073, 64
        %s2075 = scalar_lea.vmem [#allocation12], %s2074
        // Predicated region
        $region57: #{tpu_custom_call.1} parent=39 // pred_check
          %p2076 = pneg %p152
        $region58: #{tpu_custom_call.1} parent=39 // pred_check_branch
          %2078 = sbr.rel (%p2076) target = $region60
        $region59: #{tpu_custom_call.1} parent=39 // pred_region
          %s2079 = smul.u32 4, %s24
          %s2081 = ssub.s32 1024, 1024
          %2082 = vsyncadd %s2072, %s2081
          %s2083 = smul.addr %s2079, 128
          %s2084 = scalar_lea.hbm %s5, %s2083
          %s2085 = sshll.u32 %s2075, 4
          %s2086 = int_to_ptr.vmem [resolvable:$true] %s2085
          %2091 = dma.vmem_to_hbm [thread:$0]  %s2086, 1024, %s2084, %s2072, 512, 1024, 32
        $region60: #{tpu_custom_call.1} parent=39 // pred_fallthru
          _
      $region40: #{tpu_custom_call.1} parent=5 // pred_fallthru
        _
      %p2092 = scmp.le.s32.totalorder 2, %s19
      // Predicated region
      $region61: #{tpu_custom_call.1} parent=5 // pred_check
        %p2093 = pneg %p2092
      $region62: #{tpu_custom_call.1} parent=5 // pred_check_branch
        %2095 = sbr.rel (%p2093) target = $region64
      $region63: #{tpu_custom_call.1} parent=5 // pred_region
        %s2096 = ssub.s32 %s19, 2
        // Predicated region
        $region65: #{tpu_custom_call.1} parent=63 // pred_check
          %p2097 = pneg %p158
        $region66: #{tpu_custom_call.1} parent=63 // pred_check_branch
          %2099 = sbr.rel (%p2097) target = $region68
        $region67: #{tpu_custom_call.1} parent=63 // pred_region
          %s2100 = sand.u32 %s143, 1
          %s2101 = scalar_lea.sflag [#allocation6], %s2100
          %s2102 = sand.u32 %s143, 1
          %s2103 = smul.addr %s2102, 64
          %s2104 = scalar_lea.vmem [#allocation12], %s2103
          %2105 = dma.done %s2101, 1024
        $region68: #{tpu_custom_call.1} parent=63 // pred_fallthru
          _
      $region64: #{tpu_custom_call.1} parent=5 // pred_fallthru
        _
    $region6: #{tpu_custom_call.1} parent=1 // loop_footer
      %s23 = sadd.s32 1, %s19
    $region7: #{tpu_custom_call.1} parent=1 // loop_footer_branch
      %18 = sbr.rel target = $region3
    $region8: #{tpu_custom_call.1} parent=1 // loop_exit
      _
    %2106 = vsyncpa [#allocation5], 1
    %s2107 = scalar_lea.sflag [#allocation5], 1
    %2108 = vsyncpa %s2107, 1
    %2109 = vsyncpa [#allocation8], 1
    %s2110 = scalar_lea.sflag [#allocation8], 1
    %2111 = vsyncpa %s2110, 1
    %2112 = vsyncpa [#allocation11], 1
    %2113 = vsyncpa [#allocation6], 1
    %s2114 = scalar_lea.sflag [#allocation6], 1
    %2115 = vsyncpa %s2114, 1

</llo_original>
